<compile_context>
chip_gen: v6e
topology: v6e:2x2x1
jax: 0.10.0
libtpu: 0.0.40
codegen_flags: <defaults>
</compile_context>

<pallas_src>
import jax
import jax.numpy as jnp
from jax.experimental import pallas as pl
from jax.experimental.pallas import tpu as pltpu

LN_EPS = 1e-5
_HP = jax.lax.Precision.HIGHEST   # exact f32 matmul semantics (match PyTorch)


def _round_up(n, m):
    return ((n + m - 1) // m) * m


def _vmem_budget_bytes():
    """Generation-aware VMEM budget: physical capacity minus compiler headroom."""
    cap = None
    try:
        cap = int(getattr(pltpu.get_tpu_info(), "vmem_capacity_bytes", 0)) or None
    except Exception:
        cap = None
    if cap is None:
        cap = 64 << 20            # conservative default (v7x: 64 MiB per TensorCore)
    return int(max(32 << 20, cap - (16 << 20)))


# ---------------------------------------------------------------------------
# shared in-kernel math
# ---------------------------------------------------------------------------

def _dual_layernorm_relu(h, gam, bet, P):
    """Two independent LayerNorms on rows [0,P) / [P,2P) of the (2P,1) column h."""
    P2 = 2 * P
    inv_p = 1.0 / float(P)
    row = jax.lax.broadcasted_iota(jnp.int32, (P2, 1), 0)
    m_mul = (row < P).astype(jnp.float32)
    m_add = 1.0 - m_mul
    mean = (m_mul * (jnp.sum(h * m_mul) * inv_p)
            + m_add * (jnp.sum(h * m_add) * inv_p))
    d = h - mean
    var = (m_mul * (jnp.sum(d * d * m_mul) * inv_p)
           + m_add * (jnp.sum(d * d * m_add) * inv_p))
    hn = d * jax.lax.rsqrt(var + LN_EPS) * gam + bet
    return jnp.maximum(hn, 0.0)                              # ReLU


def _fused_transform(ctx, w1, b1, gam, bet, w2, b2, P):
    """Both channel_mul / channel_add 1x1-conv MLPs as one stacked computation.

    ctx: (C, 1).  Returns t: (2C, 1); rows [0,C) = pre-sigmoid mul logits,
    rows [C,2C) = add term (block-diagonal stage-2 keeps the branches separate).
    """
    h = jnp.dot(w1, ctx, precision=_HP, preferred_element_type=jnp.float32) + b1
    hn = _dual_layernorm_relu(h, gam, bet, P)
    return jnp.dot(w2, hn, precision=_HP, preferred_element_type=jnp.float32) + b2


# ---------------------------------------------------------------------------
# Path A: single fused kernel (one (C, HW) block per batch element)
# ---------------------------------------------------------------------------

def _make_fused_kernel(C, P):
    def kernel(x_ref, wm_ref, w1_ref, w2_ref, b1_ref, g_ref, be_ref, b2_ref, out_ref):
        x = x_ref[0]                                         # (C, HW)

        # conv_mask logits: exact f32 VPU contraction over C.  The scalar conv
        # bias is omitted: softmax is invariant to a constant logit shift.
        logits = jnp.sum(x * wm_ref[...], axis=0, keepdims=True)        # (1, HW)

        e = jnp.exp(logits - jnp.max(logits, axis=-1, keepdims=True))   # (1, HW)
        denom = jnp.sum(e, axis=-1, keepdims=True)                      # (1, 1)

        # Context pooling on the MXU (contract HW): (C, HW) x (1, HW)^T -> (C, 1)
        ctx = jax.lax.dot_general(x, e, (((1,), (1,)), ((), ())),
                                  precision=_HP,
                                  preferred_element_type=jnp.float32)
        ctx = ctx / denom                                    # exact divide

        t = _fused_transform(ctx, w1_ref[...], b1_ref[...], g_ref[...],
                             be_ref[...], w2_ref[...], b2_ref[...], P)
        mul_term = jax.nn.sigmoid(t[:C])                     # (C, 1)
        add_term = t[C:]                                     # (C, 1)

        out_ref[0] = x * mul_term + add_term
    return kernel


# ---------------------------------------------------------------------------
# Path B: HW-tiled two-kernel split (large C*HW blocks)
# ---------------------------------------------------------------------------

def _make_reduce_kernel(C, P, HW, T):
    need_mask = (HW % T) != 0

    def kernel(x_ref, wm_ref, w1_ref, w2_ref, b1_ref, g_ref, be_ref, b2_ref,
               terms_ref, m_sc, l_sc, ctx_sc):
        ti = pl.program_id(1)

        @pl.when(ti == 0)
        def _():
            m_sc[...] = jnp.full_like(m_sc, -1e30)
            l_sc[...] = jnp.zeros_like(l_sc)
            ctx_sc[...] = jnp.zeros_like(ctx_sc)

        x = x_ref[0]                                         # (C, T)
        if need_mask:
            lane = jax.lax.broadcasted_iota(jnp.int32, (1, T), 1)
            valid = (ti * T + lane) < HW
            x = jnp.where(valid, x, 0.0)

        logits = jnp.sum(x * wm_ref[...], axis=0, keepdims=True)        # (1, T)
        if need_mask:
            logits = jnp.where(valid, logits, -1e30)

        # online-softmax accumulation over HW tiles
        m_old = m_sc[...]
        m_new = jnp.maximum(m_old, jnp.max(logits, axis=-1, keepdims=True))
        alpha = jnp.exp(m_old - m_new)
        e = jnp.exp(logits - m_new)                          # padded lanes -> 0
        l_sc[...] = alpha * l_sc[...] + jnp.sum(e, axis=-1, keepdims=True)
        ctx_sc[...] = alpha * ctx_sc[...] + jax.lax.dot_general(
            x, e, (((1,), (1,)), ((), ())),
            precision=_HP, preferred_element_type=jnp.float32)
        m_sc[...] = m_new

        @pl.when(ti == pl.num_programs(1) - 1)
        def _():
            ctx = ctx_sc[...] / l_sc[...]                    # exact divide
            t = _fused_transform(ctx, w1_ref[...], b1_ref[...], g_ref[...],
                                 be_ref[...], w2_ref[...], b2_ref[...], P)
            r = jax.lax.broadcasted_iota(jnp.int32, (2 * C, 1), 0)
            terms_ref[0] = jnp.where(r < C, jax.nn.sigmoid(t), t)
    return kernel


def _make_apply_kernel(C):
    def kernel(x_ref, terms_ref, out_ref):
        t = terms_ref[0]                                     # (2C, 1)
        out_ref[0] = x_ref[0] * t[:C] + t[C:]
    return kernel


# ---------------------------------------------------------------------------
# parameter packing & wrapper
# ---------------------------------------------------------------------------

def _pack_params(params, C, P):
    f32 = jnp.float32
    wm = params["w_mask"].astype(f32).reshape(C, 1)                       # (C, 1)
    w1 = jnp.concatenate([params["w1_mul"], params["w1_add"]],
                         axis=0).astype(f32)                              # (2P, C)
    z = jnp.zeros((C, P), f32)
    w2 = jnp.concatenate(
        [jnp.concatenate([params["w2_mul"].astype(f32), z], axis=1),
         jnp.concatenate([z, params["w2_add"].astype(f32)], axis=1)],
        axis=0)                                                           # (2C, 2P)

    def cat(a, b):
        return jnp.concatenate([a, b], axis=0).astype(f32)                # (n, 1)

    b1 = cat(params["b1_mul"], params["b1_add"])
    g = cat(params["g_mul"], params["g_add"])
    be = cat(params["be_mul"], params["be_add"])
    b2 = cat(params["b2_mul"], params["b2_add"])
    return wm, w1, w2, b1, g, be, b2


def _param_specs(C, P2, idx):
    return [pl.BlockSpec((C, 1), idx),
            pl.BlockSpec((P2, C), idx),
            pl.BlockSpec((2 * C, P2), idx),
            pl.BlockSpec((P2, 1), idx),
            pl.BlockSpec((P2, 1), idx),
            pl.BlockSpec((P2, 1), idx),
            pl.BlockSpec((2 * C, 1), idx)]


def context_block_2d(x_nchw, params, *, hw_tile=None):
    """ContextBlock2d forward (pool='att', fusions=['channel_add','channel_mul']).

    x_nchw: (B, C, H, W) float32 -> (B, C, H, W) float32.
    hw_tile: optional override forcing the HW-tiled two-kernel path with this
             spatial tile size (multiple of 128).  None -> auto select.
    """
    B, C, H, W = x_nchw.shape
    HW = H * W
    P = params["w1_mul"].shape[0]
    P2 = 2 * P

    x = x_nchw.astype(jnp.float32).reshape(B, C, HW)        # metadata-only reshape
    wm, w1, w2, b1, g, be, b2 = _pack_params(params, C, P)
    param_bytes = 4 * int(wm.size + w1.size + w2.size + b1.size + g.size
                          + be.size + b2.size)
    # NOTE: constant-index parameter blocks are DMA'd only once (not per grid step).
    # pipeline_mode=pl.Buffered(1) could single-buffer them, omitted for portability.

    block_bytes = C * HW * 4
    budget = _vmem_budget_bytes()
    # 2x in + 2x out (double-buffered) + ~2 block-sized in-kernel temporaries.
    fused_fits = (6 * block_bytes + 2 * param_bytes + (2 << 20)) <= budget

    if hw_tile is None and fused_fits:
        # ----- Path A: single fused kernel, one (C, HW) block per batch element -----
        cost = pl.CostEstimate(
            flops=int(B * (6 * C * HW + 8 * P * C)),
            transcendentals=int(B * (HW + 2 * C + P2)),
            bytes_accessed=int(2 * B * block_bytes + param_bytes))
        # TODO(synk): for B == 1 (or odd B) on dual-TensorCore chips (v7x), add a second
        # parallel grid axis so both cores are fed; with B >= 2 the batch axis suffices.
        out = pl.pallas_call(
            _make_fused_kernel(C, P),
            out_shape=jax.ShapeDtypeStruct((B, C, HW), jnp.float32),
            grid=(B,),
            in_specs=[pl.BlockSpec((1, C, HW), lambda b: (b, 0, 0))]
                     + _param_specs(C, P2, lambda b: (0, 0)),
            out_specs=pl.BlockSpec((1, C, HW), lambda b: (b, 0, 0)),
            compiler_params=pltpu.CompilerParams(
                dimension_semantics=("parallel",),
                vmem_limit_bytes=budget),
            cost_estimate=cost,
        )(x, wm, w1, w2, b1, g, be, b2)
        return out.reshape(B, C, H, W)

    # ----- Path B: HW-tiled two-kernel split ---------------------------------------
    if hw_tile is not None:
        T = int(hw_tile)
    else:
        T = int((budget - 2 * param_bytes - (4 << 20)) // (6 * C * 4))
        T = max(128, (T // 128) * 128)
        T = min(T, _round_up(HW, 128))
    assert T % 128 == 0, "hw_tile must be a multiple of 128"
    nT = -(-HW // T)

    # Kernel 1: online-softmax reduction over HW tiles -> per-batch mul/add vectors.
    cost1 = pl.CostEstimate(
        flops=int(B * (4 * C * HW + 8 * P * C)),
        transcendentals=int(B * (HW + 2 * C + P2 + 2 * nT)),
        bytes_accessed=int(B * block_bytes + param_bytes + 8 * B * C))
    terms = pl.pallas_call(
        _make_reduce_kernel(C, P, HW, T),
        out_shape=jax.ShapeDtypeStruct((B, 2 * C, 1), jnp.float32),
        grid=(B, nT),
        in_specs=[pl.BlockSpec((1, C, T), lambda b, t: (b, 0, t))]
                 + _param_specs(C, P2, lambda b, t: (0, 0)),
        out_specs=pl.BlockSpec((1, 2 * C, 1), lambda b, t: (b, 0, 0)),
        scratch_shapes=[pltpu.VMEM((1, 1), jnp.float32),   # running max
                        pltpu.VMEM((1, 1), jnp.float32),   # running denom
                        pltpu.VMEM((C, 1), jnp.float32)],  # context accumulator
        compiler_params=pltpu.CompilerParams(
            dimension_semantics=("parallel", "arbitrary"),
            vmem_limit_bytes=budget),
        cost_estimate=cost1,
    )(x, wm, w1, w2, b1, g, be, b2)

    # Kernel 2: fully parallel elementwise fuse, tiled over (B, HW tiles).
    cost2 = pl.CostEstimate(
        flops=int(2 * B * C * HW), transcendentals=0,
        bytes_accessed=int(2 * B * block_bytes + 8 * B * C))
    out = pl.pallas_call(
        _make_apply_kernel(C),
        out_shape=jax.ShapeDtypeStruct((B, C, HW), jnp.float32),
        grid=(B, nT),
        in_specs=[pl.BlockSpec((1, C, T), lambda b, t: (b, 0, t)),
                  pl.BlockSpec((1, 2 * C, 1), lambda b, t: (b, 0, 0))],
        out_specs=pl.BlockSpec((1, C, T), lambda b, t: (b, 0, t)),
        compiler_params=pltpu.CompilerParams(
            dimension_semantics=("parallel", "parallel"),
            vmem_limit_bytes=budget),
        cost_estimate=cost2,
    )(x, terms)
    return out.reshape(B, C, H, W)


# ---------------------------------------------------------------------------
# pure-JAX reference (replicates the PyTorch forward semantics)
# ---------------------------------------------------------------------------

def reference_forward(x_nchw, params):
    B, C, H, W = x_nchw.shape
    xr = x_nchw.reshape(B, C, H * W)
    hp = _HP

    logits = jnp.einsum("oc,bcs->bs", params["w_mask"], xr,
                        precision=hp) + params["b_mask"][0, 0]
    p = jax.nn.softmax(logits, axis=-1)                      # softmax over H*W
    context = jnp.einsum("bcs,bs->bc", xr, p, precision=hp)  # (B, C)

    def transform(ctx, w1, b1, g, be, w2, b2):
        h = jnp.einsum("bc,pc->bp", ctx, w1, precision=hp) + b1[:, 0]
        mean = h.mean(-1, keepdims=True)
        var = ((h - mean) ** 2).mean(-1, keepdims=True)
        hn = (h - mean) / jnp.sqrt(var + LN_EPS) * g[:, 0] + be[:, 0]
        hn = jnp.maximum(hn, 0.0)
        return jnp.einsum("bp,cp->bc", hn, w2, precision=hp) + b2[:, 0]

    mul_t = jax.nn.sigmoid(transform(context, params["w1_mul"], params["b1_mul"],
                                     params["g_mul"], params["be_mul"],
                                     params["w2_mul"], params["b2_mul"]))
    add_t = transform(context, params["w1_add"], params["b1_add"],
                      params["g_add"], params["be_add"],
                      params["w2_add"], params["b2_add"])
    out = xr * mul_t[:, :, None] + add_t[:, :, None]
    return out.reshape(B, C, H, W)


def init_params(key, inplanes, planes):
    ks = jax.random.split(key, 10)
    s = 0.1
    return {
        # conv_mask: Conv2d(inplanes, 1, 1)
        "w_mask": s * jax.random.normal(ks[0], (1, inplanes), jnp.float32),
        "b_mask": s * jax.random.normal(ks[1], (1, 1), jnp.float32),
        # channel_mul_conv: Conv(in->planes), LN([planes,1,1]), ReLU, Conv(planes->in)
        "w1_mul": s * jax.random.normal(ks[2], (planes, inplanes), jnp.float32),
        "b1_mul": s * jax.random.normal(ks[3], (planes, 1), jnp.float32),
        "g_mul": jnp.ones((planes, 1), jnp.float32),
        "be_mul": jnp.zeros((planes, 1), jnp.float32),
        "w2_mul": s * jax.random.normal(ks[4], (inplanes, planes), jnp.float32),
        "b2_mul": s * jax.random.normal(ks[5], (inplanes, 1), jnp.float32),
        # channel_add_conv (same structure)
        "w1_add": s * jax.random.normal(ks[6], (planes, inplanes), jnp.float32),
        "b1_add": s * jax.random.normal(ks[7], (planes, 1), jnp.float32),
        "g_add": jnp.ones((planes, 1), jnp.float32),
        "be_add": jnp.zeros((planes, 1), jnp.float32),
        "w2_add": s * jax.random.normal(ks[8], (inplanes, planes), jnp.float32),
        "b2_add": s * jax.random.normal(ks[9], (inplanes, 1), jnp.float32),
    }


if __name__ == "__main__":
    B, C, H, W = 2, 4, 16, 16       # inplanes=4
    planes = 2                       # bottleneck planes

    key = jax.random.PRNGKey(0)
    kx, kp = jax.random.split(key)
    x = jax.random.normal(kx, (B, C, H, W), jnp.float32)
    params = init_params(kp, C, planes)

    ref = jax.block_until_ready(reference_forward(x, params))

    # Path A: single fused kernel (auto-selected at these shapes).
    out_fused = jax.block_until_ready(context_block_2d(x, params))
    # Path B: HW-tiled two-kernel split (forced, to exercise the large-shape path).
    out_tiled = jax.block_until_ready(context_block_2d(x, params, hw_tile=128))

    assert out_fused.shape == (B, C, H, W)
    assert out_tiled.shape == (B, C, H, W)
    err_fused = float(jnp.max(jnp.abs(out_fused - ref)))
    err_tiled = float(jnp.max(jnp.abs(out_tiled - ref)))
    assert err_fused < 1e-5, f"fused path mismatch vs reference: {err_fused}"
    assert err_tiled < 1e-5, f"tiled path mismatch vs reference: {err_tiled}"
    print("KERNEL_OK")
</pallas_src>

<mosaic_0001>
module attributes {stable_mosaic.version = 11 : i64} {
  func.func @kernel(%arg0: i32, %arg1: memref<1x4x256xf32, #tpu.memory_space<vmem>>, %arg2: memref<4x1xf32, #tpu.memory_space<vmem>>, %arg3: memref<4x4xf32, #tpu.memory_space<vmem>>, %arg4: memref<8x4xf32, #tpu.memory_space<vmem>>, %arg5: memref<4x1xf32, #tpu.memory_space<vmem>>, %arg6: memref<4x1xf32, #tpu.memory_space<vmem>>, %arg7: memref<4x1xf32, #tpu.memory_space<vmem>>, %arg8: memref<8x1xf32, #tpu.memory_space<vmem>>, %arg9: memref<1x4x256xf32, #tpu.memory_space<vmem>>) attributes {dimension_semantics = [#tpu.dimension_semantics<parallel>], iteration_bounds = array<i64: 2>, scalar_prefetch = 0 : i64, scratch_operands = 0 : i64, tpu.core_type = #tpu.core_type<tc>, window_params = [{transform_indices = @transform_0, window_bounds = array<i64: 1, 4, 256>}, {pipeline_mode = #tpu.pipeline_mode<synchronous>, transform_indices = @transform_1, window_bounds = array<i64: 4, 1>}, {pipeline_mode = #tpu.pipeline_mode<synchronous>, transform_indices = @transform_2, window_bounds = array<i64: 4, 4>}, {pipeline_mode = #tpu.pipeline_mode<synchronous>, transform_indices = @transform_3, window_bounds = array<i64: 8, 4>}, {pipeline_mode = #tpu.pipeline_mode<synchronous>, transform_indices = @transform_4, window_bounds = array<i64: 4, 1>}, {pipeline_mode = #tpu.pipeline_mode<synchronous>, transform_indices = @transform_5, window_bounds = array<i64: 4, 1>}, {pipeline_mode = #tpu.pipeline_mode<synchronous>, transform_indices = @transform_6, window_bounds = array<i64: 4, 1>}, {pipeline_mode = #tpu.pipeline_mode<synchronous>, transform_indices = @transform_7, window_bounds = array<i64: 8, 1>}, {transform_indices = @transform_8, window_bounds = array<i64: 1, 4, 256>}]} {
    %c0 = arith.constant 0 : index
    %c0_0 = arith.constant 0 : index
    %c0_1 = arith.constant 0 : index
    %0 = vector.load %arg1[%c0, %c0_0, %c0_1] : memref<1x4x256xf32, #tpu.memory_space<vmem>>, vector<1x4x256xf32>
    %1 = vector.shape_cast %0 : vector<1x4x256xf32> to vector<4x256xf32>
    %c0_2 = arith.constant 0 : index
    %c0_3 = arith.constant 0 : index
    %2 = vector.load %arg2[%c0_2, %c0_3] : memref<4x1xf32, #tpu.memory_space<vmem>>, vector<4x1xf32>
    %3 = vector.broadcast %2 : vector<4x1xf32> to vector<4x256xf32>
    %4 = arith.mulf %1, %3 : vector<4x256xf32>
    %cst = arith.constant dense<0.000000e+00> : vector<256xf32>
    %5 = vector.multi_reduction <add>, %4, %cst [0] : vector<4x256xf32> to vector<256xf32>
    %6 = vector.shape_cast %5 : vector<256xf32> to vector<1x256xf32>
    %cst_4 = arith.constant dense<0xFF800000> : vector<1xf32>
    %7 = vector.multi_reduction <maximumf>, %6, %cst_4 [1] : vector<1x256xf32> to vector<1xf32>
    %8 = vector.shape_cast %7 : vector<1xf32> to vector<1x1xf32>
    %9 = vector.broadcast %8 : vector<1x1xf32> to vector<1x256xf32>
    %10 = arith.subf %6, %9 : vector<1x256xf32>
    %11 = math.exp %10 : vector<1x256xf32>
    %cst_5 = arith.constant dense<0.000000e+00> : vector<1xf32>
    %12 = vector.multi_reduction <add>, %11, %cst_5 [1] : vector<1x256xf32> to vector<1xf32>
    %13 = vector.shape_cast %12 : vector<1xf32> to vector<1x1xf32>
    %cst_6 = arith.constant dense<0.000000e+00> : vector<4x1xf32>
    %14 = tpu.matmul %1, %11, %cst_6 {dimension_numbers = #tpu.dot_dimension_numbers<[1], [1], [0], [0], [0, 0, 1, 0], [], []>, precision = #tpu.contract_precision<fp32>} : vector<4x256xf32>, vector<1x256xf32>, vector<4x1xf32> -> vector<4x1xf32>
    %15 = vector.broadcast %13 : vector<1x1xf32> to vector<4x1xf32>
    %16 = arith.divf %14, %15 : vector<4x1xf32>
    %c0_7 = arith.constant 0 : index
    %c0_8 = arith.constant 0 : index
    %17 = vector.load %arg3[%c0_7, %c0_8] : memref<4x4xf32, #tpu.memory_space<vmem>>, vector<4x4xf32>
    %c0_9 = arith.constant 0 : index
    %c0_10 = arith.constant 0 : index
    %18 = vector.load %arg5[%c0_9, %c0_10] : memref<4x1xf32, #tpu.memory_space<vmem>>, vector<4x1xf32>
    %c0_11 = arith.constant 0 : index
    %c0_12 = arith.constant 0 : index
    %19 = vector.load %arg6[%c0_11, %c0_12] : memref<4x1xf32, #tpu.memory_space<vmem>>, vector<4x1xf32>
    %c0_13 = arith.constant 0 : index
    %c0_14 = arith.constant 0 : index
    %20 = vector.load %arg7[%c0_13, %c0_14] : memref<4x1xf32, #tpu.memory_space<vmem>>, vector<4x1xf32>
    %c0_15 = arith.constant 0 : index
    %c0_16 = arith.constant 0 : index
    %21 = vector.load %arg4[%c0_15, %c0_16] : memref<8x4xf32, #tpu.memory_space<vmem>>, vector<8x4xf32>
    %c0_17 = arith.constant 0 : index
    %c0_18 = arith.constant 0 : index
    %22 = vector.load %arg8[%c0_17, %c0_18] : memref<8x1xf32, #tpu.memory_space<vmem>>, vector<8x1xf32>
    %cst_19 = arith.constant dense<0.000000e+00> : vector<4x1xf32>
    %23 = tpu.matmul %17, %16, %cst_19 {dimension_numbers = #tpu.dot_dimension_numbers<[1], [0], [0], [1], [0, 0, 1, 1], [], []>, precision = #tpu.contract_precision<fp32>} : vector<4x4xf32>, vector<4x1xf32>, vector<4x1xf32> -> vector<4x1xf32>
    %24 = arith.addf %23, %18 : vector<4x1xf32>
    %25 = tpu.iota {dimensions = array<i32: 0>} : vector<4x1xi32>
    %c2_i32 = arith.constant 2 : i32
    %26 = vector.broadcast %c2_i32 : i32 to vector<4x1xi32>
    %27 = arith.cmpi slt, %25, %26 : vector<4x1xi32>
    %28 = arith.extui %27 : vector<4x1xi1> to vector<4x1xi32>
    %29 = arith.sitofp %28 : vector<4x1xi32> to vector<4x1xf32>
    %cst_20 = arith.constant 1.000000e+00 : f32
    %30 = vector.broadcast %cst_20 : f32 to vector<4x1xf32>
    %31 = arith.subf %30, %29 : vector<4x1xf32>
    %32 = arith.mulf %24, %29 : vector<4x1xf32>
    %33 = vector.shape_cast %32 : vector<4x1xf32> to vector<1x4x1xf32>
    %cst_21 = arith.constant dense<0.000000e+00> : vector<1xf32>
    %34 = vector.multi_reduction <add>, %33, %cst_21 [1, 2] : vector<1x4x1xf32> to vector<1xf32>
    %35 = vector.shape_cast %34 : vector<1xf32> to vector<1x1x1xf32>
    %36 = vector.extract %35[0, 0, 0] : f32 from vector<1x1x1xf32>
    %cst_22 = arith.constant 5.000000e-01 : f32
    %37 = arith.mulf %36, %cst_22 : f32
    %38 = vector.broadcast %37 : f32 to vector<4x1xf32>
    %39 = arith.mulf %29, %38 : vector<4x1xf32>
    %40 = arith.mulf %24, %31 : vector<4x1xf32>
    %41 = vector.shape_cast %40 : vector<4x1xf32> to vector<1x4x1xf32>
    %cst_23 = arith.constant dense<0.000000e+00> : vector<1xf32>
    %42 = vector.multi_reduction <add>, %41, %cst_23 [1, 2] : vector<1x4x1xf32> to vector<1xf32>
    %43 = vector.shape_cast %42 : vector<1xf32> to vector<1x1x1xf32>
    %44 = vector.extract %43[0, 0, 0] : f32 from vector<1x1x1xf32>
    %cst_24 = arith.constant 5.000000e-01 : f32
    %45 = arith.mulf %44, %cst_24 : f32
    %46 = vector.broadcast %45 : f32 to vector<4x1xf32>
    %47 = arith.mulf %31, %46 : vector<4x1xf32>
    %48 = arith.addf %39, %47 : vector<4x1xf32>
    %49 = arith.subf %24, %48 : vector<4x1xf32>
    %50 = arith.mulf %49, %49 : vector<4x1xf32>
    %51 = arith.mulf %50, %29 : vector<4x1xf32>
    %52 = vector.shape_cast %51 : vector<4x1xf32> to vector<1x4x1xf32>
    %cst_25 = arith.constant dense<0.000000e+00> : vector<1xf32>
    %53 = vector.multi_reduction <add>, %52, %cst_25 [1, 2] : vector<1x4x1xf32> to vector<1xf32>
    %54 = vector.shape_cast %53 : vector<1xf32> to vector<1x1x1xf32>
    %55 = vector.extract %54[0, 0, 0] : f32 from vector<1x1x1xf32>
    %cst_26 = arith.constant 5.000000e-01 : f32
    %56 = arith.mulf %55, %cst_26 : f32
    %57 = vector.broadcast %56 : f32 to vector<4x1xf32>
    %58 = arith.mulf %29, %57 : vector<4x1xf32>
    %59 = arith.mulf %49, %49 : vector<4x1xf32>
    %60 = arith.mulf %59, %31 : vector<4x1xf32>
    %61 = vector.shape_cast %60 : vector<4x1xf32> to vector<1x4x1xf32>
    %cst_27 = arith.constant dense<0.000000e+00> : vector<1xf32>
    %62 = vector.multi_reduction <add>, %61, %cst_27 [1, 2] : vector<1x4x1xf32> to vector<1xf32>
    %63 = vector.shape_cast %62 : vector<1xf32> to vector<1x1x1xf32>
    %64 = vector.extract %63[0, 0, 0] : f32 from vector<1x1x1xf32>
    %cst_28 = arith.constant 5.000000e-01 : f32
    %65 = arith.mulf %64, %cst_28 : f32
    %66 = vector.broadcast %65 : f32 to vector<4x1xf32>
    %67 = arith.mulf %31, %66 : vector<4x1xf32>
    %68 = arith.addf %58, %67 : vector<4x1xf32>
    %cst_29 = arith.constant 9.99999974E-6 : f32
    %69 = vector.broadcast %cst_29 : f32 to vector<4x1xf32>
    %70 = arith.addf %68, %69 : vector<4x1xf32>
    %71 = math.rsqrt %70 : vector<4x1xf32>
    %72 = arith.mulf %49, %71 : vector<4x1xf32>
    %73 = arith.mulf %72, %19 : vector<4x1xf32>
    %74 = arith.addf %73, %20 : vector<4x1xf32>
    %cst_30 = arith.constant 0.000000e+00 : f32
    %75 = vector.broadcast %cst_30 : f32 to vector<4x1xf32>
    %76 = arith.maximumf %74, %75 : vector<4x1xf32>
    %cst_31 = arith.constant dense<0.000000e+00> : vector<8x1xf32>
    %77 = tpu.matmul %21, %76, %cst_31 {dimension_numbers = #tpu.dot_dimension_numbers<[1], [0], [0], [1], [0, 0, 1, 1], [], []>, precision = #tpu.contract_precision<fp32>} : vector<8x4xf32>, vector<4x1xf32>, vector<8x1xf32> -> vector<8x1xf32>
    %78 = arith.addf %77, %22 : vector<8x1xf32>
    %79 = vector.extract_strided_slice %78 {offsets = [0, 0], sizes = [4, 1], strides = [1, 1]} : vector<8x1xf32> to vector<4x1xf32>
    %80 = arith.negf %79 : vector<4x1xf32>
    %81 = math.exp %80 : vector<4x1xf32>
    %cst_32 = arith.constant 1.000000e+00 : f32
    %82 = vector.broadcast %cst_32 : f32 to vector<4x1xf32>
    %83 = arith.addf %82, %81 : vector<4x1xf32>
    %84 = arith.divf %82, %83 : vector<4x1xf32>
    %85 = vector.extract_strided_slice %78 {offsets = [4, 0], sizes = [4, 1], strides = [1, 1]} : vector<8x1xf32> to vector<4x1xf32>
    %86 = vector.broadcast %84 : vector<4x1xf32> to vector<4x256xf32>
    %87 = arith.mulf %1, %86 : vector<4x256xf32>
    %88 = vector.broadcast %85 : vector<4x1xf32> to vector<4x256xf32>
    %89 = arith.addf %87, %88 : vector<4x256xf32>
    %c0_33 = arith.constant 0 : index
    %c0_34 = arith.constant 0 : index
    %c0_35 = arith.constant 0 : index
    %90 = vector.load %arg9[%c0_33, %c0_34, %c0_35] : memref<1x4x256xf32, #tpu.memory_space<vmem>>, vector<1x4x256xf32>
    %91 = vector.shape_cast %90 : vector<1x4x256xf32> to vector<4x256xf32>
    %92 = vector.shape_cast %89 : vector<4x256xf32> to vector<1x4x256xf32>
    tpu.vector_store %arg9[%c0_33, %c0_34, %c0_35], %92 {strides = array<i32>} : memref<1x4x256xf32, #tpu.memory_space<vmem>>, vector<1x4x256xf32>,
    return
  }
  func.func @transform_0(%arg0: i32) -> (i32, i32, i32) {
    %c0_i32 = arith.constant 0 : i32
    %c0_i32_0 = arith.constant 0 : i32
    %c0_i32_1 = arith.constant 0 : i32
    return %arg0, %c0_i32, %c0_i32_0 : i32, i32, i32
  }
  func.func @transform_1(%arg0: i32) -> (i32, i32) {
    %c0_i32 = arith.constant 0 : i32
    %c0_i32_0 = arith.constant 0 : i32
    %c0_i32_1 = arith.constant 0 : i32
    return %c0_i32, %c0_i32_0 : i32, i32
  }
  func.func @transform_2(%arg0: i32) -> (i32, i32) {
    %c0_i32 = arith.constant 0 : i32
    %c0_i32_0 = arith.constant 0 : i32
    %c0_i32_1 = arith.constant 0 : i32
    return %c0_i32, %c0_i32_0 : i32, i32
  }
  func.func @transform_3(%arg0: i32) -> (i32, i32) {
    %c0_i32 = arith.constant 0 : i32
    %c0_i32_0 = arith.constant 0 : i32
    %c0_i32_1 = arith.constant 0 : i32
    return %c0_i32, %c0_i32_0 : i32, i32
  }
  func.func @transform_4(%arg0: i32) -> (i32, i32) {
    %c0_i32 = arith.constant 0 : i32
    %c0_i32_0 = arith.constant 0 : i32
    %c0_i32_1 = arith.constant 0 : i32
    return %c0_i32, %c0_i32_0 : i32, i32
  }
  func.func @transform_5(%arg0: i32) -> (i32, i32) {
    %c0_i32 = arith.constant 0 : i32
    %c0_i32_0 = arith.constant 0 : i32
    %c0_i32_1 = arith.constant 0 : i32
    return %c0_i32, %c0_i32_0 : i32, i32
  }
  func.func @transform_6(%arg0: i32) -> (i32, i32) {
    %c0_i32 = arith.constant 0 : i32
    %c0_i32_0 = arith.constant 0 : i32
    %c0_i32_1 = arith.constant 0 : i32
    return %c0_i32, %c0_i32_0 : i32, i32
  }
  func.func @transform_7(%arg0: i32) -> (i32, i32) {
    %c0_i32 = arith.constant 0 : i32
    %c0_i32_0 = arith.constant 0 : i32
    %c0_i32_1 = arith.constant 0 : i32
    return %c0_i32, %c0_i32_0 : i32, i32
  }
  func.func @transform_8(%arg0: i32) -> (i32, i32, i32) {
    %c0_i32 = arith.constant 0 : i32
    %c0_i32_0 = arith.constant 0 : i32
    %c0_i32_1 = arith.constant 0 : i32
    return %arg0, %c0_i32, %c0_i32_0 : i32, i32, i32
  }
}

</mosaic_0001>

<llo_original>
// kernel: tpu_custom_call.1
$region0: #{tpu_custom_call.1}
  #allocation0 [shape = 'u32[]', space=smem, size = 0x4, offset = 0x4, fixed_abs, tag = 'smem constant byte address 0x4 - core index']
  #allocation1 [shape = 'u32[144,128]{1,0:T(1,128)}', space=vmem, size = 0x12000, scoped, tag = 'internal scratch']
  %s0 = inlined_call_operand.vmem [shape: f32[2,4,256], index: 0, kind: input, shape index: {}]
  %s1 = inlined_call_operand.vmem [shape: f32[4,1], index: 1, kind: input, shape index: {}]
  %s2 = inlined_call_operand.vmem [shape: f32[4,4], index: 2, kind: input, shape index: {}]
  %s3 = inlined_call_operand.vmem [shape: f32[8,4], index: 3, kind: input, shape index: {}]
  %s4 = inlined_call_operand.vmem [shape: f32[4,1], index: 4, kind: input, shape index: {}]
  %s5 = inlined_call_operand.vmem [shape: f32[4,1], index: 5, kind: input, shape index: {}]
  %s6 = inlined_call_operand.vmem [shape: f32[4,1], index: 6, kind: input, shape index: {}]
  %s7 = inlined_call_operand.vmem [shape: f32[8,1], index: 7, kind: input, shape index: {}]
  %s8 = inlined_call_operand.hbm [shape: f32[2,4,256], index: 8, kind: output, shape index: {}]
  %s9 = sld [smem:[#allocation0]]
  $region65: #{tpu_custom_call.1} parent=0
    _
  %s11 = ssub.s32 1, %s9
  %s12 = scalar_select 0, %s11, %s9
  $region1: #{tpu_custom_call.1} parent=0
    #allocation2 [shape = 'u8[8192]{0}', space=vmem, size = 0x2000, scoped, tag = 'output window, operand 0']
    #allocation3 [shape = 's32[2]{0}', space=sflag, size = 0x8, scoped, tag = 'scoped memory for tpu_custom_call.1']
    %13 = vsyncpa [#allocation3], 0
    %s14 = scalar_lea.sflag [#allocation3], 1
    %15 = vsyncpa %s14, 0
    loop: start=0, step=1, limit=4
    $region2: #{tpu_custom_call.1} parent=1 // loop_pre_header
      _
    $region3: #{tpu_custom_call.1} parent=1 // loop_header
      %s17 = sphi 0, %s21
      %p18 = scmp.ge.s32.totalorder %s17, 4
      %s27 = sphi 0, %s29
      %s30 = sphi 0, %s27
      %s31 = sphi 0, %s30
      %s47 = sphi 0, %s31
      %s51 = sphi 0, %s51
      %s53 = sphi 0, %s51
      %s54 = sphi 0, %s53
      %s68 = sphi 0, %s54
      %s72 = sphi 0, %s72
      %s74 = sphi 0, %s72
      %s75 = sphi 0, %s74
      %s89 = sphi 0, %s75
      %s93 = sphi 0, %s93
      %s95 = sphi 0, %s93
      %s96 = sphi 0, %s95
      %s110 = sphi 0, %s96
      %s114 = sphi 0, %s114
      %s116 = sphi 0, %s114
      %s117 = sphi 0, %s116
      %s131 = sphi 0, %s117
      %s135 = sphi 0, %s135
      %s137 = sphi 0, %s135
      %s138 = sphi 0, %s137
      %s152 = sphi 0, %s138
      %s156 = sphi 0, %s156
      %s158 = sphi 0, %s156
      %s159 = sphi 0, %s158
      %s173 = sphi 0, %s159
      %s177 = sphi 0, %s177
      %s179 = sphi 0, %s177
      %s180 = sphi 0, %s179
      %s194 = sphi 0, %s180
      %s200 = sphi 0, %s202
      %s203 = sphi 0, %s200
      %s204 = sphi 0, %s203
      %s220 = sphi 0, %s204
    $region4: #{tpu_custom_call.1} parent=1 // loop_header_branch
      %20 = sbr.rel (%p18) target = $region8
    $region5: #{tpu_custom_call.1} parent=1 // loop_body
      %s22 = ssub.s32 %s17, 1
      %s23 = ssub.s32 %s17, 2
      %s24 = sadd.s32 %s17, 1
      %s25 = ssub.s32 %s17, %s24
      %p26 = scmp.eq.s32.totalorder %s25, 0
      %s28 = sadd.s32 %s27, 1
      %s29 = scalar_select %p26, %s27, %s28
      %p32 = pneg %p26
      %p33 = scmp.eq.s32.totalorder %s17, 1
      %p34 = por %p32, %p33
      %p35 = scmp.ne.s32.totalorder %s27, %s30
      %p36 = scmp.eq.s32.totalorder %s17, 0
      %p37 = por %p35, %p36
      %p38 = scmp.ne.s32.totalorder %s27, %s30
      %p39 = scmp.eq.s32.totalorder %s22, 1
      %p40 = por %p38, %p39
      %p41 = scmp.ne.s32.totalorder %s30, %s31
      %p42 = scmp.eq.s32.totalorder %s22, 0
      %p43 = por %p41, %p42
      %p44 = scmp.ne.s32.totalorder %s30, %s31
      %p45 = scmp.eq.s32.totalorder %s23, 1
      %p46 = por %p44, %p45
      %p48 = scmp.ne.s32.totalorder %s31, %s47
      %p49 = scmp.eq.s32.totalorder %s23, 0
      %p50 = por %p48, %p49
      %s52 = sadd.s32 %s51, 1
      %p55 = scmp.eq.s32.totalorder %s17, 1
      %p56 = scmp.ne.s32.totalorder %s51, %s53
      %p57 = scmp.eq.s32.totalorder %s17, 0
      %p58 = por %p56, %p57
      %p59 = scmp.ne.s32.totalorder %s51, %s53
      %p60 = scmp.eq.s32.totalorder %s22, 1
      %p61 = por %p59, %p60
      %p62 = scmp.ne.s32.totalorder %s53, %s54
      %p63 = scmp.eq.s32.totalorder %s22, 0
      %p64 = por %p62, %p63
      %p65 = scmp.ne.s32.totalorder %s53, %s54
      %p66 = scmp.eq.s32.totalorder %s23, 1
      %p67 = por %p65, %p66
      %p69 = scmp.ne.s32.totalorder %s54, %s68
      %p70 = scmp.eq.s32.totalorder %s23, 0
      %p71 = por %p69, %p70
      %s73 = sadd.s32 %s72, 1
      %p76 = scmp.eq.s32.totalorder %s17, 1
      %p77 = scmp.ne.s32.totalorder %s72, %s74
      %p78 = scmp.eq.s32.totalorder %s17, 0
      %p79 = por %p77, %p78
      %p80 = scmp.ne.s32.totalorder %s72, %s74
      %p81 = scmp.eq.s32.totalorder %s22, 1
      %p82 = por %p80, %p81
      %p83 = scmp.ne.s32.totalorder %s74, %s75
      %p84 = scmp.eq.s32.totalorder %s22, 0
      %p85 = por %p83, %p84
      %p86 = scmp.ne.s32.totalorder %s74, %s75
      %p87 = scmp.eq.s32.totalorder %s23, 1
      %p88 = por %p86, %p87
      %p90 = scmp.ne.s32.totalorder %s75, %s89
      %p91 = scmp.eq.s32.totalorder %s23, 0
      %p92 = por %p90, %p91
      %s94 = sadd.s32 %s93, 1
      %p97 = scmp.eq.s32.totalorder %s17, 1
      %p98 = scmp.ne.s32.totalorder %s93, %s95
      %p99 = scmp.eq.s32.totalorder %s17, 0
      %p100 = por %p98, %p99
      %p101 = scmp.ne.s32.totalorder %s93, %s95
      %p102 = scmp.eq.s32.totalorder %s22, 1
      %p103 = por %p101, %p102
      %p104 = scmp.ne.s32.totalorder %s95, %s96
      %p105 = scmp.eq.s32.totalorder %s22, 0
      %p106 = por %p104, %p105
      %p107 = scmp.ne.s32.totalorder %s95, %s96
      %p108 = scmp.eq.s32.totalorder %s23, 1
      %p109 = por %p107, %p108
      %p111 = scmp.ne.s32.totalorder %s96, %s110
      %p112 = scmp.eq.s32.totalorder %s23, 0
      %p113 = por %p111, %p112
      %s115 = sadd.s32 %s114, 1
      %p118 = scmp.eq.s32.totalorder %s17, 1
      %p119 = scmp.ne.s32.totalorder %s114, %s116
      %p120 = scmp.eq.s32.totalorder %s17, 0
      %p121 = por %p119, %p120
      %p122 = scmp.ne.s32.totalorder %s114, %s116
      %p123 = scmp.eq.s32.totalorder %s22, 1
      %p124 = por %p122, %p123
      %p125 = scmp.ne.s32.totalorder %s116, %s117
      %p126 = scmp.eq.s32.totalorder %s22, 0
      %p127 = por %p125, %p126
      %p128 = scmp.ne.s32.totalorder %s116, %s117
      %p129 = scmp.eq.s32.totalorder %s23, 1
      %p130 = por %p128, %p129
      %p132 = scmp.ne.s32.totalorder %s117, %s131
      %p133 = scmp.eq.s32.totalorder %s23, 0
      %p134 = por %p132, %p133
      %s136 = sadd.s32 %s135, 1
      %p139 = scmp.eq.s32.totalorder %s17, 1
      %p140 = scmp.ne.s32.totalorder %s135, %s137
      %p141 = scmp.eq.s32.totalorder %s17, 0
      %p142 = por %p140, %p141
      %p143 = scmp.ne.s32.totalorder %s135, %s137
      %p144 = scmp.eq.s32.totalorder %s22, 1
      %p145 = por %p143, %p144
      %p146 = scmp.ne.s32.totalorder %s137, %s138
      %p147 = scmp.eq.s32.totalorder %s22, 0
      %p148 = por %p146, %p147
      %p149 = scmp.ne.s32.totalorder %s137, %s138
      %p150 = scmp.eq.s32.totalorder %s23, 1
      %p151 = por %p149, %p150
      %p153 = scmp.ne.s32.totalorder %s138, %s152
      %p154 = scmp.eq.s32.totalorder %s23, 0
      %p155 = por %p153, %p154
      %s157 = sadd.s32 %s156, 1
      %p160 = scmp.eq.s32.totalorder %s17, 1
      %p161 = scmp.ne.s32.totalorder %s156, %s158
      %p162 = scmp.eq.s32.totalorder %s17, 0
      %p163 = por %p161, %p162
      %p164 = scmp.ne.s32.totalorder %s156, %s158
      %p165 = scmp.eq.s32.totalorder %s22, 1
      %p166 = por %p164, %p165
      %p167 = scmp.ne.s32.totalorder %s158, %s159
      %p168 = scmp.eq.s32.totalorder %s22, 0
      %p169 = por %p167, %p168
      %p170 = scmp.ne.s32.totalorder %s158, %s159
      %p171 = scmp.eq.s32.totalorder %s23, 1
      %p172 = por %p170, %p171
      %p174 = scmp.ne.s32.totalorder %s159, %s173
      %p175 = scmp.eq.s32.totalorder %s23, 0
      %p176 = por %p174, %p175
      %s178 = sadd.s32 %s177, 1
      %p181 = scmp.eq.s32.totalorder %s17, 1
      %p182 = scmp.ne.s32.totalorder %s177, %s179
      %p183 = scmp.eq.s32.totalorder %s17, 0
      %p184 = por %p182, %p183
      %p185 = scmp.ne.s32.totalorder %s177, %s179
      %p186 = scmp.eq.s32.totalorder %s22, 1
      %p187 = por %p185, %p186
      %p188 = scmp.ne.s32.totalorder %s179, %s180
      %p189 = scmp.eq.s32.totalorder %s22, 0
      %p190 = por %p188, %p189
      %p191 = scmp.ne.s32.totalorder %s179, %s180
      %p192 = scmp.eq.s32.totalorder %s23, 1
      %p193 = por %p191, %p192
      %p195 = scmp.ne.s32.totalorder %s180, %s194
      %p196 = scmp.eq.s32.totalorder %s23, 0
      %p197 = por %p195, %p196
      %s198 = ssub.s32 %s17, %s24
      %p199 = scmp.eq.s32.totalorder %s198, 0
      %s201 = sadd.s32 %s200, 1
      %s202 = scalar_select %p199, %s200, %s201
      %p205 = pneg %p199
      %p206 = scmp.eq.s32.totalorder %s17, 1
      %p207 = por %p205, %p206
      %p208 = scmp.ne.s32.totalorder %s200, %s203
      %p209 = scmp.eq.s32.totalorder %s17, 0
      %p210 = por %p208, %p209
      %p211 = scmp.ne.s32.totalorder %s200, %s203
      %p212 = scmp.eq.s32.totalorder %s22, 1
      %p213 = por %p211, %p212
      %p214 = scmp.ne.s32.totalorder %s203, %s204
      %p215 = scmp.eq.s32.totalorder %s22, 0
      %p216 = por %p214, %p215
      %p217 = scmp.ne.s32.totalorder %s203, %s204
      %p218 = scmp.eq.s32.totalorder %s23, 1
      %p219 = por %p217, %p218
      %p221 = scmp.ne.s32.totalorder %s204, %s220
      %p222 = scmp.eq.s32.totalorder %s23, 0
      %p223 = por %p221, %p222
      %p224 = scmp.le.s32.totalorder 1, %s17
      %p225 = scmp.lt.s32.totalorder %s17, 3
      %p226 = pnand %p224, %p225
      %p227 = pneg %p226
      // Predicated region
      $region9: #{tpu_custom_call.1} parent=5 // pred_check
        _
      $region10: #{tpu_custom_call.1} parent=5 // pred_check_branch
        %229 = sbr.rel (%p226) target = $region12
      $region11: #{tpu_custom_call.1} parent=5 // pred_region
        %s230 = ssub.s32 %s17, 1
        // Predicated region
        $region13: #{tpu_custom_call.1} parent=11 // pred_check
          %p231 = pneg %p64
        $region14: #{tpu_custom_call.1} parent=11 // pred_check_branch
          %233 = sbr.rel (%p231) target = $region16
        $region15: #{tpu_custom_call.1} parent=11 // pred_region
          _
        $region16: #{tpu_custom_call.1} parent=11 // pred_fallthru
          _
        // Predicated region
        $region17: #{tpu_custom_call.1} parent=11 // pred_check
          %p234 = pneg %p85
        $region18: #{tpu_custom_call.1} parent=11 // pred_check_branch
          %236 = sbr.rel (%p234) target = $region20
        $region19: #{tpu_custom_call.1} parent=11 // pred_region
          _
        $region20: #{tpu_custom_call.1} parent=11 // pred_fallthru
          _
        // Predicated region
        $region21: #{tpu_custom_call.1} parent=11 // pred_check
          %p237 = pneg %p106
        $region22: #{tpu_custom_call.1} parent=11 // pred_check_branch
          %239 = sbr.rel (%p237) target = $region24
        $region23: #{tpu_custom_call.1} parent=11 // pred_region
          _
        $region24: #{tpu_custom_call.1} parent=11 // pred_fallthru
          _
        // Predicated region
        $region25: #{tpu_custom_call.1} parent=11 // pred_check
          %p240 = pneg %p127
        $region26: #{tpu_custom_call.1} parent=11 // pred_check_branch
          %242 = sbr.rel (%p240) target = $region28
        $region27: #{tpu_custom_call.1} parent=11 // pred_region
          _
        $region28: #{tpu_custom_call.1} parent=11 // pred_fallthru
          _
        // Predicated region
        $region29: #{tpu_custom_call.1} parent=11 // pred_check
          %p243 = pneg %p148
        $region30: #{tpu_custom_call.1} parent=11 // pred_check_branch
          %245 = sbr.rel (%p243) target = $region32
        $region31: #{tpu_custom_call.1} parent=11 // pred_region
          _
        $region32: #{tpu_custom_call.1} parent=11 // pred_fallthru
          _
        // Predicated region
        $region33: #{tpu_custom_call.1} parent=11 // pred_check
          %p246 = pneg %p169
        $region34: #{tpu_custom_call.1} parent=11 // pred_check_branch
          %248 = sbr.rel (%p246) target = $region36
        $region35: #{tpu_custom_call.1} parent=11 // pred_region
          _
        $region36: #{tpu_custom_call.1} parent=11 // pred_fallthru
          _
        // Predicated region
        $region37: #{tpu_custom_call.1} parent=11 // pred_check
          %p249 = pneg %p190
        $region38: #{tpu_custom_call.1} parent=11 // pred_check_branch
          %251 = sbr.rel (%p249) target = $region40
        $region39: #{tpu_custom_call.1} parent=11 // pred_region
          _
        $region40: #{tpu_custom_call.1} parent=11 // pred_fallthru
          _
      $region12: #{tpu_custom_call.1} parent=5 // pred_fallthru
        _
      %p252 = scmp.lt.s32.totalorder %s17, 2
      // Predicated region
      $region41: #{tpu_custom_call.1} parent=5 // pred_check
        %p253 = pneg %p252
      $region42: #{tpu_custom_call.1} parent=5 // pred_check_branch
        %255 = sbr.rel (%p253) target = $region44
      $region43: #{tpu_custom_call.1} parent=5 // pred_region
        // Predicated region
        $region45: #{tpu_custom_call.1} parent=43 // pred_check
          %p256 = pneg %p37
        $region46: #{tpu_custom_call.1} parent=43 // pred_check_branch
          %258 = sbr.rel (%p256) target = $region48
        $region47: #{tpu_custom_call.1} parent=43 // pred_region
          %p259 = scmp.lt.s32.totalorder %s17, 1
          %s260 = scalar_select %p259, %s17, 1
          %s261 = smul.addr %s260, 2
          %s262 = smul.addr %s261, 4
          %s263 = scalar_lea.vmem %s0, %s262
        $region48: #{tpu_custom_call.1} parent=43 // pred_fallthru
          _
      $region44: #{tpu_custom_call.1} parent=5 // pred_fallthru
        _
      %p264 = scmp.le.s32.totalorder 1, %s17
      %p265 = scmp.lt.s32.totalorder %s17, 3
      %p266 = pnand %p264, %p265
      %p267 = pneg %p266
      // Predicated region
      $region49: #{tpu_custom_call.1} parent=5 // pred_check
        _
      $region50: #{tpu_custom_call.1} parent=5 // pred_check_branch
        %269 = sbr.rel (%p266) target = $region52
      $region51: #{tpu_custom_call.1} parent=5 // pred_region
        %s270 = ssub.s32 %s17, 1
        %p271 = scmp.lt.s32.totalorder %s22, 1
        %s272 = scalar_select %p271, %s22, 1
        %s273 = smul.addr %s272, 2
        %s274 = smul.addr %s273, 4
        %s275 = scalar_lea.vmem %s0, %s274
        %p276 = pneg %p43
        %p277 = pneg %p40
        %p278 = pneg %p64
        %p279 = pneg %p61
        %p280 = pneg %p85
        %p281 = pneg %p82
        %p282 = pneg %p106
        %p283 = pneg %p103
        %p284 = pneg %p127
        %p285 = pneg %p124
        %p286 = pneg %p148
        %p287 = pneg %p145
        %p288 = pneg %p169
        %p289 = pneg %p166
        %p290 = pneg %p190
        %p291 = pneg %p187
        %p292 = pneg %p216
        %p293 = pneg %p213
        %s294 = sand.u32 %s203, 1
        %s295 = scalar_lea.sflag [#allocation3], %s294
        %s296 = sand.u32 %s203, 1
        %s297 = smul.addr %s296, 8
        %s298 = scalar_lea.vmem [#allocation2], %s297
        %p299 = scmp.lt.s32.totalorder %s22, 1
        %s300 = scalar_select %p299, %s22, 1
        %s301 = smul.addr %s300, 2
        %s302 = smul.addr %s301, 4
        %s303 = scalar_lea.vmem %s0, %s302
        %v304 = vld [vmem:[%s303] sm:$0xff]
        %v305 = vld [vmem:[%s1] sm:$0xf]
        %307 = vset.pattern.permute.xlu0 0
        %308 = vperm.xlu0 %307, %v305
        %v309 = vpop.permute.xlu0 %308
        %v311 = vunpack.c.l.s4 839922192
        %v312 = vunpack.c.0.s8 %v311
        %v313 = vlaneseq
        %v314 = vshrl.u32 %v313, 7
        %v315 = vsub.s32 %v312, %v314
        %v316 = vrot.slane %v309, %v315
        %v318 = vmul.f32 %v304, %v316
        %v320 = vcombine.high %v318, %v318
        %vm322 = vcmask 1043456
        %v323 = vsel %vm322, %v318, 0.0
        %v324 = vrot.slane %v323, 4
        %v325 = vadd.f32 %v323, %v324
        %v326 = vrot.slane %v325, 2
        %v327 = vadd.f32 %v325, %v326
        %v328 = vrot.slane %v327, 1
        %v329 = vadd.f32 %v327, %v328
        %v330 = vsel %vm322, %v320, 0.0
        %v331 = vrot.slane %v330, 4
        %v332 = vadd.f32 %v330, %v331
        %v333 = vrot.slane %v332, 2
        %v334 = vadd.f32 %v332, %v333
        %v335 = vrot.slane %v334, 1
        %v336 = vadd.f32 %v334, %v335
        %v337 = vmax.f32 %v329, %v336
        %338 = vmax.xlane.f32.xlu0 %v337
        %v339 = vpop.xlane.xlu0 %338
        %v340 = vsub.f32 %v329, %v339
        %v341 = vsub.f32 %v336, %v339
        %v342 = vmul.f32 %v340, 1.442695
        %v343 = vpow.pop %v342
        %v344 = vmul.f32 %v341, 1.442695
        %v345 = vpow.pop %v344
        %v346 = vadd.f32 %v343, %v345
        %347 = vadd.xlane.f32.xlu0 %v346
        %v348 = vpop.xlane.xlu0 %347
        %v351 = vcombine.low %v343, %v345
        %v353 = vmul.f32 %v304, %v351
        %v355 = vcombine.high %v353, %v353
        %v357 = vsel %vm322, %v353, 0.0
        %v358 = vsel %vm322, %v355, 0.0
        %v359 = vadd.f32 %v357, %v358
        %360 = vadd.xlane.f32.xlu0 %v359
        %v361 = vpop.xlane.xlu0 %360
        %v362 = vrcp.pop %v348
        %v363 = vmul.f32 %v361, %v362
        %v364 = vld [vmem:[%s2] sm:$0xf]
        %v365 = vld [vmem:[%s4] sm:$0xf]
        %v366 = vld [vmem:[%s5] sm:$0xf]
        %v367 = vld [vmem:[%s6] sm:$0xf]
        %v368 = vld [vmem:[%s3] sm:$0xff]
        %v369 = vld [vmem:[%s7] sm:$0xff]
        %vm370 = vcmask 31744
        %v372 = vsel %vm370, %v364, 0
        %v375 = vsel %vm322, %v363, 0
        %377 = vmatprep.subr.mxu0 0.0
        %378 = vmatpush1.msra.mxu0 0.0
        %379 = vmatprep.subr.mxu0 0.0
        %380 = vmatpush1.msra.mxu0 0.0
        %381 = vmatprep.subr.mxu0 0.0
        %382 = vmatpush1.msra.mxu0 0.0
        %383 = vmatprep.subr.mxu0 0.0
        %384 = vmatpush1.msra.mxu0 0.0
        %385 = vmatprep.subr.mxu0 0.0
        %386 = vmatpush1.msra.mxu0 0.0
        %387 = vmatprep.subr.mxu0 0.0
        %388 = vmatpush1.msra.mxu0 0.0
        %389 = vmatprep.subr.mxu0 0.0
        %390 = vmatpush1.msra.mxu0 0.0
        %391 = vmatprep.subr.mxu0 0.0
        %392 = vmatpush1.msra.mxu0 0.0
        %393 = vmatprep.subr.mxu0 0.0
        %394 = vmatpush1.msra.mxu0 0.0
        %395 = vmatprep.subr.mxu0 0.0
        %396 = vmatpush1.msra.mxu0 0.0
        %397 = vmatprep.subr.mxu0 0.0
        %398 = vmatpush1.msra.mxu0 0.0
        %399 = vmatprep.subr.mxu0 0.0
        %400 = vmatpush1.msra.mxu0 0.0
        %401 = vmatprep.subr.mxu0 0.0
        %402 = vmatpush1.msra.mxu0 0.0
        %403 = vmatprep.subr.mxu0 0.0
        %404 = vmatpush1.msra.mxu0 0.0
        %405 = vmatprep.subr.mxu0 0.0
        %406 = vmatpush1.msra.mxu0 0.0
        %407 = vmatprep.subr.mxu0 0.0
        %v408 = vand.u32 %v375, 4294901760
        %409 = vmatpush1.msra.mxu0 %v408
        %410 = vmatprep.subr.mxu0 0.0
        %411 = vmatpush2.msra.mxu0 0.0
        %412 = vmatprep.subr.mxu0 0.0
        %413 = vmatpush2.msra.mxu0 0.0
        %414 = vmatprep.subr.mxu0 0.0
        %415 = vmatpush2.msra.mxu0 0.0
        %416 = vmatprep.subr.mxu0 0.0
        %417 = vmatpush2.msra.mxu0 0.0
        %418 = vmatprep.subr.mxu0 0.0
        %419 = vmatpush2.msra.mxu0 0.0
        %420 = vmatprep.subr.mxu0 0.0
        %421 = vmatpush2.msra.mxu0 0.0
        %422 = vmatprep.subr.mxu0 0.0
        %423 = vmatpush2.msra.mxu0 0.0
        %424 = vmatprep.subr.mxu0 0.0
        %425 = vmatpush2.msra.mxu0 0.0
        %426 = vmatprep.subr.mxu0 0.0
        %427 = vmatpush2.msra.mxu0 0.0
        %428 = vmatprep.subr.mxu0 0.0
        %429 = vmatpush2.msra.mxu0 0.0
        %430 = vmatprep.subr.mxu0 0.0
        %431 = vmatpush2.msra.mxu0 0.0
        %432 = vmatprep.subr.mxu0 0.0
        %433 = vmatpush2.msra.mxu0 0.0
        %434 = vmatprep.subr.mxu0 0.0
        %435 = vmatpush2.msra.mxu0 0.0
        %436 = vmatprep.subr.mxu0 0.0
        %437 = vmatpush2.msra.mxu0 0.0
        %438 = vmatprep.subr.mxu0 0.0
        %439 = vmatpush2.msra.mxu0 0.0
        %440 = vmatprep.subr.mxu0 0.0
        %441 = vmatpush2.msra.mxu0 0.0
        %442 = vmatprep.mubr.f32.mxu0 0.0
        %v443 = vand.u32 %v372, 4294901760
        %v444 = vsub.f32 %v372, %v443
        %v445 = vand.u32 %v444, 4294901760
        %v446 = vsub.f32 %v444, %v445
        %v447 = vand.u32 %v446, 4294901760
        %448 = vmatmul.mubr.f32.gmra.mxu0 %v447
        %v449 = vpop.f32.mrf.mxu0
        %v450 = vadd.f32 %v365, %v449
        %v451 = vpop.f32.mrf.mxu0
        %452 = vdwg.mxu0
        %453 = vmatprep.subr.mxu0 0.0
        %454 = vmatpush1.msra.mxu0 0.0
        %455 = vmatprep.subr.mxu0 0.0
        %456 = vmatpush1.msra.mxu0 0.0
        %457 = vmatprep.subr.mxu0 0.0
        %458 = vmatpush1.msra.mxu0 0.0
        %459 = vmatprep.subr.mxu0 0.0
        %460 = vmatpush1.msra.mxu0 0.0
        %461 = vmatprep.subr.mxu0 0.0
        %462 = vmatpush1.msra.mxu0 0.0
        %463 = vmatprep.subr.mxu0 0.0
        %464 = vmatpush1.msra.mxu0 0.0
        %465 = vmatprep.subr.mxu0 0.0
        %466 = vmatpush1.msra.mxu0 0.0
        %467 = vmatprep.subr.mxu0 0.0
        %468 = vmatpush1.msra.mxu0 0.0
        %469 = vmatprep.subr.mxu0 0.0
        %470 = vmatpush1.msra.mxu0 0.0
        %471 = vmatprep.subr.mxu0 0.0
        %472 = vmatpush1.msra.mxu0 0.0
        %473 = vmatprep.subr.mxu0 0.0
        %474 = vmatpush1.msra.mxu0 0.0
        %475 = vmatprep.subr.mxu0 0.0
        %476 = vmatpush1.msra.mxu0 0.0
        %477 = vmatprep.subr.mxu0 0.0
        %478 = vmatpush1.msra.mxu0 0.0
        %479 = vmatprep.subr.mxu0 0.0
        %480 = vmatpush1.msra.mxu0 0.0
        %481 = vmatprep.subr.mxu0 0.0
        %482 = vmatpush1.msra.mxu0 0.0
        %483 = vmatprep.subr.mxu0 0.0
        %v484 = vand.u32 %v375, 4294901760
        %v485 = vsub.f32 %v375, %v484
        %v486 = vand.u32 %v485, 4294901760
        %v487 = vsub.f32 %v485, %v486
        %v488 = vand.u32 %v487, 4294901760
        %489 = vmatpush1.msra.mxu0 %v488
        %490 = vmatprep.subr.mxu0 0.0
        %491 = vmatpush2.msra.mxu0 0.0
        %492 = vmatprep.subr.mxu0 0.0
        %493 = vmatpush2.msra.mxu0 0.0
        %494 = vmatprep.subr.mxu0 0.0
        %495 = vmatpush2.msra.mxu0 0.0
        %496 = vmatprep.subr.mxu0 0.0
        %497 = vmatpush2.msra.mxu0 0.0
        %498 = vmatprep.subr.mxu0 0.0
        %499 = vmatpush2.msra.mxu0 0.0
        %500 = vmatprep.subr.mxu0 0.0
        %501 = vmatpush2.msra.mxu0 0.0
        %502 = vmatprep.subr.mxu0 0.0
        %503 = vmatpush2.msra.mxu0 0.0
        %504 = vmatprep.subr.mxu0 0.0
        %505 = vmatpush2.msra.mxu0 0.0
        %506 = vmatprep.subr.mxu0 0.0
        %507 = vmatpush2.msra.mxu0 0.0
        %508 = vmatprep.subr.mxu0 0.0
        %509 = vmatpush2.msra.mxu0 0.0
        %510 = vmatprep.subr.mxu0 0.0
        %511 = vmatpush2.msra.mxu0 0.0
        %512 = vmatprep.subr.mxu0 0.0
        %513 = vmatpush2.msra.mxu0 0.0
        %514 = vmatprep.subr.mxu0 0.0
        %515 = vmatpush2.msra.mxu0 0.0
        %516 = vmatprep.subr.mxu0 0.0
        %517 = vmatpush2.msra.mxu0 0.0
        %518 = vmatprep.subr.mxu0 0.0
        %519 = vmatpush2.msra.mxu0 0.0
        %520 = vmatprep.subr.mxu0 0.0
        %521 = vmatpush2.msra.mxu0 0.0
        %522 = vmatprep.mubr.f32.mxu0 0.0
        %v523 = vand.u32 %v372, 4294901760
        %524 = vmatmul.mubr.f32.gmra.mxu0 %v523
        %v525 = vpop.f32.mrf.mxu0
        %v526 = vadd.f32 %v450, %v525
        %v527 = vpop.f32.mrf.mxu0
        %528 = vdwg.mxu0
        %529 = vmatprep.subr.mxu0 0.0
        %530 = vmatpush1.msra.mxu0 0.0
        %531 = vmatprep.subr.mxu0 0.0
        %532 = vmatpush1.msra.mxu0 0.0
        %533 = vmatprep.subr.mxu0 0.0
        %534 = vmatpush1.msra.mxu0 0.0
        %535 = vmatprep.subr.mxu0 0.0
        %536 = vmatpush1.msra.mxu0 0.0
        %537 = vmatprep.subr.mxu0 0.0
        %538 = vmatpush1.msra.mxu0 0.0
        %539 = vmatprep.subr.mxu0 0.0
        %540 = vmatpush1.msra.mxu0 0.0
        %541 = vmatprep.subr.mxu0 0.0
        %542 = vmatpush1.msra.mxu0 0.0
        %543 = vmatprep.subr.mxu0 0.0
        %544 = vmatpush1.msra.mxu0 0.0
        %545 = vmatprep.subr.mxu0 0.0
        %546 = vmatpush1.msra.mxu0 0.0
        %547 = vmatprep.subr.mxu0 0.0
        %548 = vmatpush1.msra.mxu0 0.0
        %549 = vmatprep.subr.mxu0 0.0
        %550 = vmatpush1.msra.mxu0 0.0
        %551 = vmatprep.subr.mxu0 0.0
        %552 = vmatpush1.msra.mxu0 0.0
        %553 = vmatprep.subr.mxu0 0.0
        %554 = vmatpush1.msra.mxu0 0.0
        %555 = vmatprep.subr.mxu0 0.0
        %556 = vmatpush1.msra.mxu0 0.0
        %557 = vmatprep.subr.mxu0 0.0
        %558 = vmatpush1.msra.mxu0 0.0
        %559 = vmatprep.subr.mxu0 0.0
        %v560 = vand.u32 %v375, 4294901760
        %v561 = vsub.f32 %v375, %v560
        %562 = vmatpush1.msra.mxu0 %v561
        %563 = vmatprep.subr.mxu0 0.0
        %564 = vmatpush2.msra.mxu0 0.0
        %565 = vmatprep.subr.mxu0 0.0
        %566 = vmatpush2.msra.mxu0 0.0
        %567 = vmatprep.subr.mxu0 0.0
        %568 = vmatpush2.msra.mxu0 0.0
        %569 = vmatprep.subr.mxu0 0.0
        %570 = vmatpush2.msra.mxu0 0.0
        %571 = vmatprep.subr.mxu0 0.0
        %572 = vmatpush2.msra.mxu0 0.0
        %573 = vmatprep.subr.mxu0 0.0
        %574 = vmatpush2.msra.mxu0 0.0
        %575 = vmatprep.subr.mxu0 0.0
        %576 = vmatpush2.msra.mxu0 0.0
        %577 = vmatprep.subr.mxu0 0.0
        %578 = vmatpush2.msra.mxu0 0.0
        %579 = vmatprep.subr.mxu0 0.0
        %580 = vmatpush2.msra.mxu0 0.0
        %581 = vmatprep.subr.mxu0 0.0
        %582 = vmatpush2.msra.mxu0 0.0
        %583 = vmatprep.subr.mxu0 0.0
        %584 = vmatpush2.msra.mxu0 0.0
        %585 = vmatprep.subr.mxu0 0.0
        %586 = vmatpush2.msra.mxu0 0.0
        %587 = vmatprep.subr.mxu0 0.0
        %588 = vmatpush2.msra.mxu0 0.0
        %589 = vmatprep.subr.mxu0 0.0
        %590 = vmatpush2.msra.mxu0 0.0
        %591 = vmatprep.subr.mxu0 0.0
        %592 = vmatpush2.msra.mxu0 0.0
        %593 = vmatprep.subr.mxu0 0.0
        %594 = vmatpush2.msra.mxu0 0.0
        %595 = vmatprep.mubr.f32.mxu0 0.0
        %v596 = vand.u32 %v372, 4294901760
        %v597 = vsub.f32 %v372, %v596
        %598 = vmatmul.mubr.f32.gmra.mxu0 %v597
        %v599 = vpop.f32.mrf.mxu0
        %v600 = vadd.f32 %v526, %v599
        %v601 = vpop.f32.mrf.mxu0
        %602 = vdwg.mxu0
        %603 = vmatprep.subr.mxu0 0.0
        %604 = vmatpush1.msra.mxu0 0.0
        %605 = vmatprep.subr.mxu0 0.0
        %606 = vmatpush1.msra.mxu0 0.0
        %607 = vmatprep.subr.mxu0 0.0
        %608 = vmatpush1.msra.mxu0 0.0
        %609 = vmatprep.subr.mxu0 0.0
        %610 = vmatpush1.msra.mxu0 0.0
        %611 = vmatprep.subr.mxu0 0.0
        %612 = vmatpush1.msra.mxu0 0.0
        %613 = vmatprep.subr.mxu0 0.0
        %614 = vmatpush1.msra.mxu0 0.0
        %615 = vmatprep.subr.mxu0 0.0
        %616 = vmatpush1.msra.mxu0 0.0
        %617 = vmatprep.subr.mxu0 0.0
        %618 = vmatpush1.msra.mxu0 0.0
        %619 = vmatprep.subr.mxu0 0.0
        %620 = vmatpush1.msra.mxu0 0.0
        %621 = vmatprep.subr.mxu0 0.0
        %622 = vmatpush1.msra.mxu0 0.0
        %623 = vmatprep.subr.mxu0 0.0
        %624 = vmatpush1.msra.mxu0 0.0
        %625 = vmatprep.subr.mxu0 0.0
        %626 = vmatpush1.msra.mxu0 0.0
        %627 = vmatprep.subr.mxu0 0.0
        %628 = vmatpush1.msra.mxu0 0.0
        %629 = vmatprep.subr.mxu0 0.0
        %630 = vmatpush1.msra.mxu0 0.0
        %631 = vmatprep.subr.mxu0 0.0
        %632 = vmatpush1.msra.mxu0 0.0
        %633 = vmatprep.subr.mxu0 0.0
        %v634 = vand.u32 %v375, 4294901760
        %635 = vmatpush1.msra.mxu0 %v634
        %636 = vmatprep.subr.mxu0 0.0
        %637 = vmatpush2.msra.mxu0 0.0
        %638 = vmatprep.subr.mxu0 0.0
        %639 = vmatpush2.msra.mxu0 0.0
        %640 = vmatprep.subr.mxu0 0.0
        %641 = vmatpush2.msra.mxu0 0.0
        %642 = vmatprep.subr.mxu0 0.0
        %643 = vmatpush2.msra.mxu0 0.0
        %644 = vmatprep.subr.mxu0 0.0
        %645 = vmatpush2.msra.mxu0 0.0
        %646 = vmatprep.subr.mxu0 0.0
        %647 = vmatpush2.msra.mxu0 0.0
        %648 = vmatprep.subr.mxu0 0.0
        %649 = vmatpush2.msra.mxu0 0.0
        %650 = vmatprep.subr.mxu0 0.0
        %651 = vmatpush2.msra.mxu0 0.0
        %652 = vmatprep.subr.mxu0 0.0
        %653 = vmatpush2.msra.mxu0 0.0
        %654 = vmatprep.subr.mxu0 0.0
        %655 = vmatpush2.msra.mxu0 0.0
        %656 = vmatprep.subr.mxu0 0.0
        %657 = vmatpush2.msra.mxu0 0.0
        %658 = vmatprep.subr.mxu0 0.0
        %659 = vmatpush2.msra.mxu0 0.0
        %660 = vmatprep.subr.mxu0 0.0
        %661 = vmatpush2.msra.mxu0 0.0
        %662 = vmatprep.subr.mxu0 0.0
        %663 = vmatpush2.msra.mxu0 0.0
        %664 = vmatprep.subr.mxu0 0.0
        %665 = vmatpush2.msra.mxu0 0.0
        %666 = vmatprep.subr.mxu0 0.0
        %667 = vmatpush2.msra.mxu0 0.0
        %668 = vmatprep.mubr.f32.mxu0 0.0
        %v669 = vand.u32 %v372, 4294901760
        %v670 = vsub.f32 %v372, %v669
        %v671 = vand.u32 %v670, 4294901760
        %672 = vmatmul.mubr.f32.gmra.mxu0 %v671
        %v673 = vpop.f32.mrf.mxu0
        %v674 = vadd.f32 %v600, %v673
        %v675 = vpop.f32.mrf.mxu0
        %676 = vdwg.mxu0
        %677 = vmatprep.subr.mxu0 0.0
        %678 = vmatpush1.msra.mxu0 0.0
        %679 = vmatprep.subr.mxu0 0.0
        %680 = vmatpush1.msra.mxu0 0.0
        %681 = vmatprep.subr.mxu0 0.0
        %682 = vmatpush1.msra.mxu0 0.0
        %683 = vmatprep.subr.mxu0 0.0
        %684 = vmatpush1.msra.mxu0 0.0
        %685 = vmatprep.subr.mxu0 0.0
        %686 = vmatpush1.msra.mxu0 0.0
        %687 = vmatprep.subr.mxu0 0.0
        %688 = vmatpush1.msra.mxu0 0.0
        %689 = vmatprep.subr.mxu0 0.0
        %690 = vmatpush1.msra.mxu0 0.0
        %691 = vmatprep.subr.mxu0 0.0
        %692 = vmatpush1.msra.mxu0 0.0
        %693 = vmatprep.subr.mxu0 0.0
        %694 = vmatpush1.msra.mxu0 0.0
        %695 = vmatprep.subr.mxu0 0.0
        %696 = vmatpush1.msra.mxu0 0.0
        %697 = vmatprep.subr.mxu0 0.0
        %698 = vmatpush1.msra.mxu0 0.0
        %699 = vmatprep.subr.mxu0 0.0
        %700 = vmatpush1.msra.mxu0 0.0
        %701 = vmatprep.subr.mxu0 0.0
        %702 = vmatpush1.msra.mxu0 0.0
        %703 = vmatprep.subr.mxu0 0.0
        %704 = vmatpush1.msra.mxu0 0.0
        %705 = vmatprep.subr.mxu0 0.0
        %706 = vmatpush1.msra.mxu0 0.0
        %707 = vmatprep.subr.mxu0 0.0
        %v708 = vand.u32 %v375, 4294901760
        %v709 = vsub.f32 %v375, %v708
        %v710 = vand.u32 %v709, 4294901760
        %711 = vmatpush1.msra.mxu0 %v710
        %712 = vmatprep.subr.mxu0 0.0
        %713 = vmatpush2.msra.mxu0 0.0
        %714 = vmatprep.subr.mxu0 0.0
        %715 = vmatpush2.msra.mxu0 0.0
        %716 = vmatprep.subr.mxu0 0.0
        %717 = vmatpush2.msra.mxu0 0.0
        %718 = vmatprep.subr.mxu0 0.0
        %719 = vmatpush2.msra.mxu0 0.0
        %720 = vmatprep.subr.mxu0 0.0
        %721 = vmatpush2.msra.mxu0 0.0
        %722 = vmatprep.subr.mxu0 0.0
        %723 = vmatpush2.msra.mxu0 0.0
        %724 = vmatprep.subr.mxu0 0.0
        %725 = vmatpush2.msra.mxu0 0.0
        %726 = vmatprep.subr.mxu0 0.0
        %727 = vmatpush2.msra.mxu0 0.0
        %728 = vmatprep.subr.mxu0 0.0
        %729 = vmatpush2.msra.mxu0 0.0
        %730 = vmatprep.subr.mxu0 0.0
        %731 = vmatpush2.msra.mxu0 0.0
        %732 = vmatprep.subr.mxu0 0.0
        %733 = vmatpush2.msra.mxu0 0.0
        %734 = vmatprep.subr.mxu0 0.0
        %735 = vmatpush2.msra.mxu0 0.0
        %736 = vmatprep.subr.mxu0 0.0
        %737 = vmatpush2.msra.mxu0 0.0
        %738 = vmatprep.subr.mxu0 0.0
        %739 = vmatpush2.msra.mxu0 0.0
        %740 = vmatprep.subr.mxu0 0.0
        %741 = vmatpush2.msra.mxu0 0.0
        %742 = vmatprep.subr.mxu0 0.0
        %743 = vmatpush2.msra.mxu0 0.0
        %744 = vmatprep.mubr.f32.mxu0 0.0
        %v745 = vand.u32 %v372, 4294901760
        %746 = vmatmul.mubr.f32.gmra.mxu0 %v745
        %v747 = vpop.f32.mrf.mxu0
        %v748 = vadd.f32 %v674, %v747
        %v749 = vpop.f32.mrf.mxu0
        %750 = vdwg.mxu0
        %751 = vmatprep.subr.mxu0 0.0
        %752 = vmatpush1.msra.mxu0 0.0
        %753 = vmatprep.subr.mxu0 0.0
        %754 = vmatpush1.msra.mxu0 0.0
        %755 = vmatprep.subr.mxu0 0.0
        %756 = vmatpush1.msra.mxu0 0.0
        %757 = vmatprep.subr.mxu0 0.0
        %758 = vmatpush1.msra.mxu0 0.0
        %759 = vmatprep.subr.mxu0 0.0
        %760 = vmatpush1.msra.mxu0 0.0
        %761 = vmatprep.subr.mxu0 0.0
        %762 = vmatpush1.msra.mxu0 0.0
        %763 = vmatprep.subr.mxu0 0.0
        %764 = vmatpush1.msra.mxu0 0.0
        %765 = vmatprep.subr.mxu0 0.0
        %766 = vmatpush1.msra.mxu0 0.0
        %767 = vmatprep.subr.mxu0 0.0
        %768 = vmatpush1.msra.mxu0 0.0
        %769 = vmatprep.subr.mxu0 0.0
        %770 = vmatpush1.msra.mxu0 0.0
        %771 = vmatprep.subr.mxu0 0.0
        %772 = vmatpush1.msra.mxu0 0.0
        %773 = vmatprep.subr.mxu0 0.0
        %774 = vmatpush1.msra.mxu0 0.0
        %775 = vmatprep.subr.mxu0 0.0
        %776 = vmatpush1.msra.mxu0 0.0
        %777 = vmatprep.subr.mxu0 0.0
        %778 = vmatpush1.msra.mxu0 0.0
        %779 = vmatprep.subr.mxu0 0.0
        %780 = vmatpush1.msra.mxu0 0.0
        %781 = vmatprep.subr.mxu0 0.0
        %v782 = vand.u32 %v375, 4294901760
        %783 = vmatpush1.msra.mxu0 %v782
        %784 = vmatprep.subr.mxu0 0.0
        %785 = vmatpush2.msra.mxu0 0.0
        %786 = vmatprep.subr.mxu0 0.0
        %787 = vmatpush2.msra.mxu0 0.0
        %788 = vmatprep.subr.mxu0 0.0
        %789 = vmatpush2.msra.mxu0 0.0
        %790 = vmatprep.subr.mxu0 0.0
        %791 = vmatpush2.msra.mxu0 0.0
        %792 = vmatprep.subr.mxu0 0.0
        %793 = vmatpush2.msra.mxu0 0.0
        %794 = vmatprep.subr.mxu0 0.0
        %795 = vmatpush2.msra.mxu0 0.0
        %796 = vmatprep.subr.mxu0 0.0
        %797 = vmatpush2.msra.mxu0 0.0
        %798 = vmatprep.subr.mxu0 0.0
        %799 = vmatpush2.msra.mxu0 0.0
        %800 = vmatprep.subr.mxu0 0.0
        %801 = vmatpush2.msra.mxu0 0.0
        %802 = vmatprep.subr.mxu0 0.0
        %803 = vmatpush2.msra.mxu0 0.0
        %804 = vmatprep.subr.mxu0 0.0
        %805 = vmatpush2.msra.mxu0 0.0
        %806 = vmatprep.subr.mxu0 0.0
        %807 = vmatpush2.msra.mxu0 0.0
        %808 = vmatprep.subr.mxu0 0.0
        %809 = vmatpush2.msra.mxu0 0.0
        %810 = vmatprep.subr.mxu0 0.0
        %811 = vmatpush2.msra.mxu0 0.0
        %812 = vmatprep.subr.mxu0 0.0
        %813 = vmatpush2.msra.mxu0 0.0
        %814 = vmatprep.subr.mxu0 0.0
        %815 = vmatpush2.msra.mxu0 0.0
        %816 = vmatprep.mubr.f32.mxu0 0.0
        %v817 = vand.u32 %v372, 4294901760
        %818 = vmatmul.mubr.f32.gmra.mxu0 %v817
        %v819 = vpop.f32.mrf.mxu0
        %v820 = vadd.f32 %v748, %v819
        %v821 = vpop.f32.mrf.mxu0
        %822 = vdwg.mxu0
        %v823 = vlaneseq
        %v824 = vshrl.u32 %v823, 7
        %vm825 = vcmp.lt.s32.totalorder %v824, 2
        %v826 = vsel %vm825, 1, 0
        %v827 = vcvt.s32.f32 %v826
        %v828 = vsub.f32 1.0, %v827
        %v829 = vmul.f32 %v820, %v827
        %vm830 = vcmask 3072
        %v831 = vsel %vm830, %v829, 0.0
        %832 = vadd.xlane.f32.xlu0 %v831
        %v833 = vpop.xlane.xlu0 %832
        %v834 = vrot.slane %v833, 4
        %v835 = vadd.f32 %v833, %v834
        %v836 = vrot.slane %v835, 2
        %v837 = vadd.f32 %v835, %v836
        %v838 = vrot.slane %v837, 1
        %v839 = vadd.f32 %v837, %v838
        %s840 = vtos %v839
        %s841 = smul.f32 %s840, 0.5
        %v842 = vstv %s841
        %v843 = vmul.f32 %v827, %v842
        %v844 = vmul.f32 %v820, %v828
        %v845 = vsel %vm830, %v844, 0.0
        %846 = vadd.xlane.f32.xlu0 %v845
        %v847 = vpop.xlane.xlu0 %846
        %v848 = vrot.slane %v847, 4
        %v849 = vadd.f32 %v847, %v848
        %v850 = vrot.slane %v849, 2
        %v851 = vadd.f32 %v849, %v850
        %v852 = vrot.slane %v851, 1
        %v853 = vadd.f32 %v851, %v852
        %s854 = vtos %v853
        %s855 = smul.f32 %s854, 0.5
        %v856 = vstv %s855
        %v857 = vmul.f32 %v828, %v856
        %v858 = vadd.f32 %v843, %v857
        %v859 = vsub.f32 %v820, %v858
        %v860 = vmul.f32 %v859, %v859
        %v861 = vmul.f32 %v860, %v827
        %v862 = vsel %vm830, %v861, 0.0
        %863 = vadd.xlane.f32.xlu0 %v862
        %v864 = vpop.xlane.xlu0 %863
        %v865 = vrot.slane %v864, 4
        %v866 = vadd.f32 %v864, %v865
        %v867 = vrot.slane %v866, 2
        %v868 = vadd.f32 %v866, %v867
        %v869 = vrot.slane %v868, 1
        %v870 = vadd.f32 %v868, %v869
        %s871 = vtos %v870
        %s872 = smul.f32 %s871, 0.5
        %v873 = vstv %s872
        %v874 = vmul.f32 %v827, %v873
        %v875 = vmul.f32 %v860, %v828
        %v876 = vsel %vm830, %v875, 0.0
        %877 = vadd.xlane.f32.xlu0 %v876
        %v878 = vpop.xlane.xlu0 %877
        %v879 = vrot.slane %v878, 4
        %v880 = vadd.f32 %v878, %v879
        %v881 = vrot.slane %v880, 2
        %v882 = vadd.f32 %v880, %v881
        %v883 = vrot.slane %v882, 1
        %v884 = vadd.f32 %v882, %v883
        %s885 = vtos %v884
        %s886 = smul.f32 %s885, 0.5
        %v887 = vstv %s886
        %v888 = vmul.f32 %v828, %v887
        %v889 = vadd.f32 %v874, %v888
        %v890 = vadd.f32 %v889, 1e-05
        %v891 = vrsqrt.pop %v890
        %v892 = vmul.f32 %v859, %v891
        %v893 = vmul.f32 %v892, %v366
        %v894 = vadd.f32 %v893, %v367
        %v895 = vmax.f32 %v894, 0.0
        %v897 = vsel %vm370, %v368, 0
        %v900 = vsel %vm322, %v895, 0
        %902 = vmatprep.subr.mxu0 0.0
        %903 = vmatpush1.msra.mxu0 0.0
        %904 = vmatprep.subr.mxu0 0.0
        %905 = vmatpush1.msra.mxu0 0.0
        %906 = vmatprep.subr.mxu0 0.0
        %907 = vmatpush1.msra.mxu0 0.0
        %908 = vmatprep.subr.mxu0 0.0
        %909 = vmatpush1.msra.mxu0 0.0
        %910 = vmatprep.subr.mxu0 0.0
        %911 = vmatpush1.msra.mxu0 0.0
        %912 = vmatprep.subr.mxu0 0.0
        %913 = vmatpush1.msra.mxu0 0.0
        %914 = vmatprep.subr.mxu0 0.0
        %915 = vmatpush1.msra.mxu0 0.0
        %916 = vmatprep.subr.mxu0 0.0
        %917 = vmatpush1.msra.mxu0 0.0
        %918 = vmatprep.subr.mxu0 0.0
        %919 = vmatpush1.msra.mxu0 0.0
        %920 = vmatprep.subr.mxu0 0.0
        %921 = vmatpush1.msra.mxu0 0.0
        %922 = vmatprep.subr.mxu0 0.0
        %923 = vmatpush1.msra.mxu0 0.0
        %924 = vmatprep.subr.mxu0 0.0
        %925 = vmatpush1.msra.mxu0 0.0
        %926 = vmatprep.subr.mxu0 0.0
        %927 = vmatpush1.msra.mxu0 0.0
        %928 = vmatprep.subr.mxu0 0.0
        %929 = vmatpush1.msra.mxu0 0.0
        %930 = vmatprep.subr.mxu0 0.0
        %931 = vmatpush1.msra.mxu0 0.0
        %932 = vmatprep.subr.mxu0 0.0
        %v933 = vand.u32 %v900, 4294901760
        %934 = vmatpush1.msra.mxu0 %v933
        %935 = vmatprep.subr.mxu0 0.0
        %936 = vmatpush2.msra.mxu0 0.0
        %937 = vmatprep.subr.mxu0 0.0
        %938 = vmatpush2.msra.mxu0 0.0
        %939 = vmatprep.subr.mxu0 0.0
        %940 = vmatpush2.msra.mxu0 0.0
        %941 = vmatprep.subr.mxu0 0.0
        %942 = vmatpush2.msra.mxu0 0.0
        %943 = vmatprep.subr.mxu0 0.0
        %944 = vmatpush2.msra.mxu0 0.0
        %945 = vmatprep.subr.mxu0 0.0
        %946 = vmatpush2.msra.mxu0 0.0
        %947 = vmatprep.subr.mxu0 0.0
        %948 = vmatpush2.msra.mxu0 0.0
        %949 = vmatprep.subr.mxu0 0.0
        %950 = vmatpush2.msra.mxu0 0.0
        %951 = vmatprep.subr.mxu0 0.0
        %952 = vmatpush2.msra.mxu0 0.0
        %953 = vmatprep.subr.mxu0 0.0
        %954 = vmatpush2.msra.mxu0 0.0
        %955 = vmatprep.subr.mxu0 0.0
        %956 = vmatpush2.msra.mxu0 0.0
        %957 = vmatprep.subr.mxu0 0.0
        %958 = vmatpush2.msra.mxu0 0.0
        %959 = vmatprep.subr.mxu0 0.0
        %960 = vmatpush2.msra.mxu0 0.0
        %961 = vmatprep.subr.mxu0 0.0
        %962 = vmatpush2.msra.mxu0 0.0
        %963 = vmatprep.subr.mxu0 0.0
        %964 = vmatpush2.msra.mxu0 0.0
        %965 = vmatprep.subr.mxu0 0.0
        %966 = vmatpush2.msra.mxu0 0.0
        %967 = vmatprep.mubr.f32.mxu0 0.0
        %v968 = vand.u32 %v897, 4294901760
        %v969 = vsub.f32 %v897, %v968
        %v970 = vand.u32 %v969, 4294901760
        %v971 = vsub.f32 %v969, %v970
        %v972 = vand.u32 %v971, 4294901760
        %973 = vmatmul.mubr.f32.gmra.mxu0 %v972
        %v974 = vpop.f32.mrf.mxu0
        %v975 = vadd.f32 %v369, %v974
        %v976 = vpop.f32.mrf.mxu0
        %977 = vdwg.mxu0
        %978 = vmatprep.subr.mxu0 0.0
        %979 = vmatpush1.msra.mxu0 0.0
        %980 = vmatprep.subr.mxu0 0.0
        %981 = vmatpush1.msra.mxu0 0.0
        %982 = vmatprep.subr.mxu0 0.0
        %983 = vmatpush1.msra.mxu0 0.0
        %984 = vmatprep.subr.mxu0 0.0
        %985 = vmatpush1.msra.mxu0 0.0
        %986 = vmatprep.subr.mxu0 0.0
        %987 = vmatpush1.msra.mxu0 0.0
        %988 = vmatprep.subr.mxu0 0.0
        %989 = vmatpush1.msra.mxu0 0.0
        %990 = vmatprep.subr.mxu0 0.0
        %991 = vmatpush1.msra.mxu0 0.0
        %992 = vmatprep.subr.mxu0 0.0
        %993 = vmatpush1.msra.mxu0 0.0
        %994 = vmatprep.subr.mxu0 0.0
        %995 = vmatpush1.msra.mxu0 0.0
        %996 = vmatprep.subr.mxu0 0.0
        %997 = vmatpush1.msra.mxu0 0.0
        %998 = vmatprep.subr.mxu0 0.0
        %999 = vmatpush1.msra.mxu0 0.0
        %1000 = vmatprep.subr.mxu0 0.0
        %1001 = vmatpush1.msra.mxu0 0.0
        %1002 = vmatprep.subr.mxu0 0.0
        %1003 = vmatpush1.msra.mxu0 0.0
        %1004 = vmatprep.subr.mxu0 0.0
        %1005 = vmatpush1.msra.mxu0 0.0
        %1006 = vmatprep.subr.mxu0 0.0
        %1007 = vmatpush1.msra.mxu0 0.0
        %1008 = vmatprep.subr.mxu0 0.0
        %v1009 = vand.u32 %v900, 4294901760
        %v1010 = vsub.f32 %v900, %v1009
        %v1011 = vand.u32 %v1010, 4294901760
        %v1012 = vsub.f32 %v1010, %v1011
        %v1013 = vand.u32 %v1012, 4294901760
        %1014 = vmatpush1.msra.mxu0 %v1013
        %1015 = vmatprep.subr.mxu0 0.0
        %1016 = vmatpush2.msra.mxu0 0.0
        %1017 = vmatprep.subr.mxu0 0.0
        %1018 = vmatpush2.msra.mxu0 0.0
        %1019 = vmatprep.subr.mxu0 0.0
        %1020 = vmatpush2.msra.mxu0 0.0
        %1021 = vmatprep.subr.mxu0 0.0
        %1022 = vmatpush2.msra.mxu0 0.0
        %1023 = vmatprep.subr.mxu0 0.0
        %1024 = vmatpush2.msra.mxu0 0.0
        %1025 = vmatprep.subr.mxu0 0.0
        %1026 = vmatpush2.msra.mxu0 0.0
        %1027 = vmatprep.subr.mxu0 0.0
        %1028 = vmatpush2.msra.mxu0 0.0
        %1029 = vmatprep.subr.mxu0 0.0
        %1030 = vmatpush2.msra.mxu0 0.0
        %1031 = vmatprep.subr.mxu0 0.0
        %1032 = vmatpush2.msra.mxu0 0.0
        %1033 = vmatprep.subr.mxu0 0.0
        %1034 = vmatpush2.msra.mxu0 0.0
        %1035 = vmatprep.subr.mxu0 0.0
        %1036 = vmatpush2.msra.mxu0 0.0
        %1037 = vmatprep.subr.mxu0 0.0
        %1038 = vmatpush2.msra.mxu0 0.0
        %1039 = vmatprep.subr.mxu0 0.0
        %1040 = vmatpush2.msra.mxu0 0.0
        %1041 = vmatprep.subr.mxu0 0.0
        %1042 = vmatpush2.msra.mxu0 0.0
        %1043 = vmatprep.subr.mxu0 0.0
        %1044 = vmatpush2.msra.mxu0 0.0
        %1045 = vmatprep.subr.mxu0 0.0
        %1046 = vmatpush2.msra.mxu0 0.0
        %1047 = vmatprep.mubr.f32.mxu0 0.0
        %v1048 = vand.u32 %v897, 4294901760
        %1049 = vmatmul.mubr.f32.gmra.mxu0 %v1048
        %v1050 = vpop.f32.mrf.mxu0
        %v1051 = vadd.f32 %v975, %v1050
        %v1052 = vpop.f32.mrf.mxu0
        %1053 = vdwg.mxu0
        %1054 = vmatprep.subr.mxu0 0.0
        %1055 = vmatpush1.msra.mxu0 0.0
        %1056 = vmatprep.subr.mxu0 0.0
        %1057 = vmatpush1.msra.mxu0 0.0
        %1058 = vmatprep.subr.mxu0 0.0
        %1059 = vmatpush1.msra.mxu0 0.0
        %1060 = vmatprep.subr.mxu0 0.0
        %1061 = vmatpush1.msra.mxu0 0.0
        %1062 = vmatprep.subr.mxu0 0.0
        %1063 = vmatpush1.msra.mxu0 0.0
        %1064 = vmatprep.subr.mxu0 0.0
        %1065 = vmatpush1.msra.mxu0 0.0
        %1066 = vmatprep.subr.mxu0 0.0
        %1067 = vmatpush1.msra.mxu0 0.0
        %1068 = vmatprep.subr.mxu0 0.0
        %1069 = vmatpush1.msra.mxu0 0.0
        %1070 = vmatprep.subr.mxu0 0.0
        %1071 = vmatpush1.msra.mxu0 0.0
        %1072 = vmatprep.subr.mxu0 0.0
        %1073 = vmatpush1.msra.mxu0 0.0
        %1074 = vmatprep.subr.mxu0 0.0
        %1075 = vmatpush1.msra.mxu0 0.0
        %1076 = vmatprep.subr.mxu0 0.0
        %1077 = vmatpush1.msra.mxu0 0.0
        %1078 = vmatprep.subr.mxu0 0.0
        %1079 = vmatpush1.msra.mxu0 0.0
        %1080 = vmatprep.subr.mxu0 0.0
        %1081 = vmatpush1.msra.mxu0 0.0
        %1082 = vmatprep.subr.mxu0 0.0
        %1083 = vmatpush1.msra.mxu0 0.0
        %1084 = vmatprep.subr.mxu0 0.0
        %v1085 = vand.u32 %v900, 4294901760
        %v1086 = vsub.f32 %v900, %v1085
        %1087 = vmatpush1.msra.mxu0 %v1086
        %1088 = vmatprep.subr.mxu0 0.0
        %1089 = vmatpush2.msra.mxu0 0.0
        %1090 = vmatprep.subr.mxu0 0.0
        %1091 = vmatpush2.msra.mxu0 0.0
        %1092 = vmatprep.subr.mxu0 0.0
        %1093 = vmatpush2.msra.mxu0 0.0
        %1094 = vmatprep.subr.mxu0 0.0
        %1095 = vmatpush2.msra.mxu0 0.0
        %1096 = vmatprep.subr.mxu0 0.0
        %1097 = vmatpush2.msra.mxu0 0.0
        %1098 = vmatprep.subr.mxu0 0.0
        %1099 = vmatpush2.msra.mxu0 0.0
        %1100 = vmatprep.subr.mxu0 0.0
        %1101 = vmatpush2.msra.mxu0 0.0
        %1102 = vmatprep.subr.mxu0 0.0
        %1103 = vmatpush2.msra.mxu0 0.0
        %1104 = vmatprep.subr.mxu0 0.0
        %1105 = vmatpush2.msra.mxu0 0.0
        %1106 = vmatprep.subr.mxu0 0.0
        %1107 = vmatpush2.msra.mxu0 0.0
        %1108 = vmatprep.subr.mxu0 0.0
        %1109 = vmatpush2.msra.mxu0 0.0
        %1110 = vmatprep.subr.mxu0 0.0
        %1111 = vmatpush2.msra.mxu0 0.0
        %1112 = vmatprep.subr.mxu0 0.0
        %1113 = vmatpush2.msra.mxu0 0.0
        %1114 = vmatprep.subr.mxu0 0.0
        %1115 = vmatpush2.msra.mxu0 0.0
        %1116 = vmatprep.subr.mxu0 0.0
        %1117 = vmatpush2.msra.mxu0 0.0
        %1118 = vmatprep.subr.mxu0 0.0
        %1119 = vmatpush2.msra.mxu0 0.0
        %1120 = vmatprep.mubr.f32.mxu0 0.0
        %v1121 = vand.u32 %v897, 4294901760
        %v1122 = vsub.f32 %v897, %v1121
        %1123 = vmatmul.mubr.f32.gmra.mxu0 %v1122
        %v1124 = vpop.f32.mrf.mxu0
        %v1125 = vadd.f32 %v1051, %v1124
        %v1126 = vpop.f32.mrf.mxu0
        %1127 = vdwg.mxu0
        %1128 = vmatprep.subr.mxu0 0.0
        %1129 = vmatpush1.msra.mxu0 0.0
        %1130 = vmatprep.subr.mxu0 0.0
        %1131 = vmatpush1.msra.mxu0 0.0
        %1132 = vmatprep.subr.mxu0 0.0
        %1133 = vmatpush1.msra.mxu0 0.0
        %1134 = vmatprep.subr.mxu0 0.0
        %1135 = vmatpush1.msra.mxu0 0.0
        %1136 = vmatprep.subr.mxu0 0.0
        %1137 = vmatpush1.msra.mxu0 0.0
        %1138 = vmatprep.subr.mxu0 0.0
        %1139 = vmatpush1.msra.mxu0 0.0
        %1140 = vmatprep.subr.mxu0 0.0
        %1141 = vmatpush1.msra.mxu0 0.0
        %1142 = vmatprep.subr.mxu0 0.0
        %1143 = vmatpush1.msra.mxu0 0.0
        %1144 = vmatprep.subr.mxu0 0.0
        %1145 = vmatpush1.msra.mxu0 0.0
        %1146 = vmatprep.subr.mxu0 0.0
        %1147 = vmatpush1.msra.mxu0 0.0
        %1148 = vmatprep.subr.mxu0 0.0
        %1149 = vmatpush1.msra.mxu0 0.0
        %1150 = vmatprep.subr.mxu0 0.0
        %1151 = vmatpush1.msra.mxu0 0.0
        %1152 = vmatprep.subr.mxu0 0.0
        %1153 = vmatpush1.msra.mxu0 0.0
        %1154 = vmatprep.subr.mxu0 0.0
        %1155 = vmatpush1.msra.mxu0 0.0
        %1156 = vmatprep.subr.mxu0 0.0
        %1157 = vmatpush1.msra.mxu0 0.0
        %1158 = vmatprep.subr.mxu0 0.0
        %v1159 = vand.u32 %v900, 4294901760
        %1160 = vmatpush1.msra.mxu0 %v1159
        %1161 = vmatprep.subr.mxu0 0.0
        %1162 = vmatpush2.msra.mxu0 0.0
        %1163 = vmatprep.subr.mxu0 0.0
        %1164 = vmatpush2.msra.mxu0 0.0
        %1165 = vmatprep.subr.mxu0 0.0
        %1166 = vmatpush2.msra.mxu0 0.0
        %1167 = vmatprep.subr.mxu0 0.0
        %1168 = vmatpush2.msra.mxu0 0.0
        %1169 = vmatprep.subr.mxu0 0.0
        %1170 = vmatpush2.msra.mxu0 0.0
        %1171 = vmatprep.subr.mxu0 0.0
        %1172 = vmatpush2.msra.mxu0 0.0
        %1173 = vmatprep.subr.mxu0 0.0
        %1174 = vmatpush2.msra.mxu0 0.0
        %1175 = vmatprep.subr.mxu0 0.0
        %1176 = vmatpush2.msra.mxu0 0.0
        %1177 = vmatprep.subr.mxu0 0.0
        %1178 = vmatpush2.msra.mxu0 0.0
        %1179 = vmatprep.subr.mxu0 0.0
        %1180 = vmatpush2.msra.mxu0 0.0
        %1181 = vmatprep.subr.mxu0 0.0
        %1182 = vmatpush2.msra.mxu0 0.0
        %1183 = vmatprep.subr.mxu0 0.0
        %1184 = vmatpush2.msra.mxu0 0.0
        %1185 = vmatprep.subr.mxu0 0.0
        %1186 = vmatpush2.msra.mxu0 0.0
        %1187 = vmatprep.subr.mxu0 0.0
        %1188 = vmatpush2.msra.mxu0 0.0
        %1189 = vmatprep.subr.mxu0 0.0
        %1190 = vmatpush2.msra.mxu0 0.0
        %1191 = vmatprep.subr.mxu0 0.0
        %1192 = vmatpush2.msra.mxu0 0.0
        %1193 = vmatprep.mubr.f32.mxu0 0.0
        %v1194 = vand.u32 %v897, 4294901760
        %v1195 = vsub.f32 %v897, %v1194
        %v1196 = vand.u32 %v1195, 4294901760
        %1197 = vmatmul.mubr.f32.gmra.mxu0 %v1196
        %v1198 = vpop.f32.mrf.mxu0
        %v1199 = vadd.f32 %v1125, %v1198
        %v1200 = vpop.f32.mrf.mxu0
        %1201 = vdwg.mxu0
        %1202 = vmatprep.subr.mxu0 0.0
        %1203 = vmatpush1.msra.mxu0 0.0
        %1204 = vmatprep.subr.mxu0 0.0
        %1205 = vmatpush1.msra.mxu0 0.0
        %1206 = vmatprep.subr.mxu0 0.0
        %1207 = vmatpush1.msra.mxu0 0.0
        %1208 = vmatprep.subr.mxu0 0.0
        %1209 = vmatpush1.msra.mxu0 0.0
        %1210 = vmatprep.subr.mxu0 0.0
        %1211 = vmatpush1.msra.mxu0 0.0
        %1212 = vmatprep.subr.mxu0 0.0
        %1213 = vmatpush1.msra.mxu0 0.0
        %1214 = vmatprep.subr.mxu0 0.0
        %1215 = vmatpush1.msra.mxu0 0.0
        %1216 = vmatprep.subr.mxu0 0.0
        %1217 = vmatpush1.msra.mxu0 0.0
        %1218 = vmatprep.subr.mxu0 0.0
        %1219 = vmatpush1.msra.mxu0 0.0
        %1220 = vmatprep.subr.mxu0 0.0
        %1221 = vmatpush1.msra.mxu0 0.0
        %1222 = vmatprep.subr.mxu0 0.0
        %1223 = vmatpush1.msra.mxu0 0.0
        %1224 = vmatprep.subr.mxu0 0.0
        %1225 = vmatpush1.msra.mxu0 0.0
        %1226 = vmatprep.subr.mxu0 0.0
        %1227 = vmatpush1.msra.mxu0 0.0
        %1228 = vmatprep.subr.mxu0 0.0
        %1229 = vmatpush1.msra.mxu0 0.0
        %1230 = vmatprep.subr.mxu0 0.0
        %1231 = vmatpush1.msra.mxu0 0.0
        %1232 = vmatprep.subr.mxu0 0.0
        %v1233 = vand.u32 %v900, 4294901760
        %v1234 = vsub.f32 %v900, %v1233
        %v1235 = vand.u32 %v1234, 4294901760
        %1236 = vmatpush1.msra.mxu0 %v1235
        %1237 = vmatprep.subr.mxu0 0.0
        %1238 = vmatpush2.msra.mxu0 0.0
        %1239 = vmatprep.subr.mxu0 0.0
        %1240 = vmatpush2.msra.mxu0 0.0
        %1241 = vmatprep.subr.mxu0 0.0
        %1242 = vmatpush2.msra.mxu0 0.0
        %1243 = vmatprep.subr.mxu0 0.0
        %1244 = vmatpush2.msra.mxu0 0.0
        %1245 = vmatprep.subr.mxu0 0.0
        %1246 = vmatpush2.msra.mxu0 0.0
        %1247 = vmatprep.subr.mxu0 0.0
        %1248 = vmatpush2.msra.mxu0 0.0
        %1249 = vmatprep.subr.mxu0 0.0
        %1250 = vmatpush2.msra.mxu0 0.0
        %1251 = vmatprep.subr.mxu0 0.0
        %1252 = vmatpush2.msra.mxu0 0.0
        %1253 = vmatprep.subr.mxu0 0.0
        %1254 = vmatpush2.msra.mxu0 0.0
        %1255 = vmatprep.subr.mxu0 0.0
        %1256 = vmatpush2.msra.mxu0 0.0
        %1257 = vmatprep.subr.mxu0 0.0
        %1258 = vmatpush2.msra.mxu0 0.0
        %1259 = vmatprep.subr.mxu0 0.0
        %1260 = vmatpush2.msra.mxu0 0.0
        %1261 = vmatprep.subr.mxu0 0.0
        %1262 = vmatpush2.msra.mxu0 0.0
        %1263 = vmatprep.subr.mxu0 0.0
        %1264 = vmatpush2.msra.mxu0 0.0
        %1265 = vmatprep.subr.mxu0 0.0
        %1266 = vmatpush2.msra.mxu0 0.0
        %1267 = vmatprep.subr.mxu0 0.0
        %1268 = vmatpush2.msra.mxu0 0.0
        %1269 = vmatprep.mubr.f32.mxu0 0.0
        %v1270 = vand.u32 %v897, 4294901760
        %1271 = vmatmul.mubr.f32.gmra.mxu0 %v1270
        %v1272 = vpop.f32.mrf.mxu0
        %v1273 = vadd.f32 %v1199, %v1272
        %v1274 = vpop.f32.mrf.mxu0
        %1275 = vdwg.mxu0
        %1276 = vmatprep.subr.mxu0 0.0
        %1277 = vmatpush1.msra.mxu0 0.0
        %1278 = vmatprep.subr.mxu0 0.0
        %1279 = vmatpush1.msra.mxu0 0.0
        %1280 = vmatprep.subr.mxu0 0.0
        %1281 = vmatpush1.msra.mxu0 0.0
        %1282 = vmatprep.subr.mxu0 0.0
        %1283 = vmatpush1.msra.mxu0 0.0
        %1284 = vmatprep.subr.mxu0 0.0
        %1285 = vmatpush1.msra.mxu0 0.0
        %1286 = vmatprep.subr.mxu0 0.0
        %1287 = vmatpush1.msra.mxu0 0.0
        %1288 = vmatprep.subr.mxu0 0.0
        %1289 = vmatpush1.msra.mxu0 0.0
        %1290 = vmatprep.subr.mxu0 0.0
        %1291 = vmatpush1.msra.mxu0 0.0
        %1292 = vmatprep.subr.mxu0 0.0
        %1293 = vmatpush1.msra.mxu0 0.0
        %1294 = vmatprep.subr.mxu0 0.0
        %1295 = vmatpush1.msra.mxu0 0.0
        %1296 = vmatprep.subr.mxu0 0.0
        %1297 = vmatpush1.msra.mxu0 0.0
        %1298 = vmatprep.subr.mxu0 0.0
        %1299 = vmatpush1.msra.mxu0 0.0
        %1300 = vmatprep.subr.mxu0 0.0
        %1301 = vmatpush1.msra.mxu0 0.0
        %1302 = vmatprep.subr.mxu0 0.0
        %1303 = vmatpush1.msra.mxu0 0.0
        %1304 = vmatprep.subr.mxu0 0.0
        %1305 = vmatpush1.msra.mxu0 0.0
        %1306 = vmatprep.subr.mxu0 0.0
        %v1307 = vand.u32 %v900, 4294901760
        %1308 = vmatpush1.msra.mxu0 %v1307
        %1309 = vmatprep.subr.mxu0 0.0
        %1310 = vmatpush2.msra.mxu0 0.0
        %1311 = vmatprep.subr.mxu0 0.0
        %1312 = vmatpush2.msra.mxu0 0.0
        %1313 = vmatprep.subr.mxu0 0.0
        %1314 = vmatpush2.msra.mxu0 0.0
        %1315 = vmatprep.subr.mxu0 0.0
        %1316 = vmatpush2.msra.mxu0 0.0
        %1317 = vmatprep.subr.mxu0 0.0
        %1318 = vmatpush2.msra.mxu0 0.0
        %1319 = vmatprep.subr.mxu0 0.0
        %1320 = vmatpush2.msra.mxu0 0.0
        %1321 = vmatprep.subr.mxu0 0.0
        %1322 = vmatpush2.msra.mxu0 0.0
        %1323 = vmatprep.subr.mxu0 0.0
        %1324 = vmatpush2.msra.mxu0 0.0
        %1325 = vmatprep.subr.mxu0 0.0
        %1326 = vmatpush2.msra.mxu0 0.0
        %1327 = vmatprep.subr.mxu0 0.0
        %1328 = vmatpush2.msra.mxu0 0.0
        %1329 = vmatprep.subr.mxu0 0.0
        %1330 = vmatpush2.msra.mxu0 0.0
        %1331 = vmatprep.subr.mxu0 0.0
        %1332 = vmatpush2.msra.mxu0 0.0
        %1333 = vmatprep.subr.mxu0 0.0
        %1334 = vmatpush2.msra.mxu0 0.0
        %1335 = vmatprep.subr.mxu0 0.0
        %1336 = vmatpush2.msra.mxu0 0.0
        %1337 = vmatprep.subr.mxu0 0.0
        %1338 = vmatpush2.msra.mxu0 0.0
        %1339 = vmatprep.subr.mxu0 0.0
        %1340 = vmatpush2.msra.mxu0 0.0
        %1341 = vmatprep.mubr.f32.mxu0 0.0
        %v1342 = vand.u32 %v897, 4294901760
        %1343 = vmatmul.mubr.f32.gmra.mxu0 %v1342
        %v1344 = vpop.f32.mrf.mxu0
        %v1345 = vadd.f32 %v1273, %v1344
        %v1346 = vpop.f32.mrf.mxu0
        %1347 = vdwg.mxu0
        %v1348 = vxor.u32 %v1345, 2147483648
        %v1349 = vmul.f32 %v1348, 1.442695
        %v1350 = vpow.pop %v1349
        %v1351 = vadd.f32 %v1350, 1.0
        %v1352 = vrcp.pop %v1351
        %v1353 = vmul.f32 1.0, %v1352
        %1355 = vset.pattern.permute.xlu0 0
        %1356 = vperm.xlu0 %1355, %v1353
        %v1357 = vpop.permute.xlu0 %1356
        %v1359 = vunpack.c.l.s4 839922192
        %v1360 = vunpack.c.0.s8 %v1359
        %v1361 = vlaneseq
        %v1362 = vshrl.u32 %v1361, 7
        %v1363 = vsub.s32 %v1360, %v1362
        %v1364 = vrot.slane %v1357, %v1363
        %v1366 = vmul.f32 %v304, %v1364
        %1368 = vset.pattern.permute.xlu0 0
        %1369 = vperm.xlu0 %1368, %v1345
        %v1370 = vpop.permute.xlu0 %1369
        %v1372 = vunpack.c.l.s4 1985246804
        %v1373 = vunpack.c.0.s8 %v1372
        %v1374 = vlaneseq
        %v1375 = vshrl.u32 %v1374, 7
        %v1376 = vsub.s32 %v1373, %v1375
        %v1377 = vrot.slane %v1370, %v1376
        %v1379 = vadd.f32 %v1366, %v1377
        %1380 = vst [vmem:[%s298] sm:$0xff] %v1379
        %s1381 = sand.u32 %s203, 1
        %s1382 = scalar_lea.sflag [#allocation3], %s1381
        %s1383 = sand.u32 %s203, 1
        %s1384 = smul.addr %s1383, 8
        %s1385 = scalar_lea.vmem [#allocation2], %s1384
        // Predicated region
        $region53: #{tpu_custom_call.1} parent=51 // pred_check
          %p1386 = pneg %p213
        $region54: #{tpu_custom_call.1} parent=51 // pred_check_branch
          %1388 = sbr.rel (%p1386) target = $region56
        $region55: #{tpu_custom_call.1} parent=51 // pred_region
          %s1390 = ssub.s32 128, 128
          %1391 = vsyncadd %s1382, %s1390
          %s1392 = smul.addr %s22, 2
          %s1393 = smul.addr %s1392, 64
          %s1394 = scalar_lea.hbm %s8, %s1393
          %s1396 = sshll.u32 %s1385, 4
          %s1397 = int_to_ptr.vmem [resolvable:$true] %s1396
          %1399 = dma.vmem_to_hbm [thread:$0]  %s1397, 128, %s1394, %s1382
        $region56: #{tpu_custom_call.1} parent=51 // pred_fallthru
          _
      $region52: #{tpu_custom_call.1} parent=5 // pred_fallthru
        _
      %p1400 = scmp.le.s32.totalorder 2, %s17
      // Predicated region
      $region57: #{tpu_custom_call.1} parent=5 // pred_check
        %p1401 = pneg %p1400
      $region58: #{tpu_custom_call.1} parent=5 // pred_check_branch
        %1403 = sbr.rel (%p1401) target = $region60
      $region59: #{tpu_custom_call.1} parent=5 // pred_region
        %s1404 = ssub.s32 %s17, 2
        // Predicated region
        $region61: #{tpu_custom_call.1} parent=59 // pred_check
          %p1405 = pneg %p219
        $region62: #{tpu_custom_call.1} parent=59 // pred_check_branch
          %1407 = sbr.rel (%p1405) target = $region64
        $region63: #{tpu_custom_call.1} parent=59 // pred_region
          %s1408 = sand.u32 %s204, 1
          %s1409 = scalar_lea.sflag [#allocation3], %s1408
          %s1410 = sand.u32 %s204, 1
          %s1411 = smul.addr %s1410, 8
          %s1412 = scalar_lea.vmem [#allocation2], %s1411
          %1413 = dma.done %s1409, 128
        $region64: #{tpu_custom_call.1} parent=59 // pred_fallthru
          _
      $region60: #{tpu_custom_call.1} parent=5 // pred_fallthru
        _
    $region6: #{tpu_custom_call.1} parent=1 // loop_footer
      %s21 = sadd.s32 1, %s17
    $region7: #{tpu_custom_call.1} parent=1 // loop_footer_branch
      %16 = sbr.rel target = $region3
    $region8: #{tpu_custom_call.1} parent=1 // loop_exit
      _
    %1414 = vsyncpa [#allocation3], 1
    %s1415 = scalar_lea.sflag [#allocation3], 1
    %1416 = vsyncpa %s1415, 1

</llo_original>
